<compile_context>
chip_gen: v5e
topology: v5e:2x2
jax: 0.10.0
libtpu: 0.0.40
codegen_flags: <defaults>
</compile_context>

<pallas_src>
import math

import jax
import jax.numpy as jnp
from jax.experimental import pallas as pl
from jax.experimental.pallas import tpu as pltpu


_TM_PACKED = 2048        # packed rows per grid step (5 MiB f32 x-tile at Kp=640)
_MIN_STEPS = 4           # keep >= this many grid steps so the pipeline overlaps
_ROW_ALIGN = 128         # packed-row tile granularity (multiple of 8 sublanes)
_SMALL_M = 1024          # below this many logical rows, plain XLA dot wins
_VMEM_LIMIT = 32 << 20   # safe on v5e/v6e/v7x; real footprint ~12.4 MiB


def _round_up(x, n):
    return ((x + n - 1) // n) * n


def _pack_factor(out_dim):
    # Pack P logical rows per lane-dense row so the packed output width
    # P*out_dim is a multiple of 128 lanes (unmasked vst) and the packed
    # input width P*5*out_dim is lane-dense too.
    pack = math.lcm(out_dim, 128) // out_dim
    return pack if pack <= 16 else 1


def pack_seq_combine_params(weight, bias):
    """One-time (init-time) packing of nn.Linear(5*D -> D) parameters.

    weight : (D, 5*D)  -- PyTorch nn.Linear layout
    bias   : (D,)
    """
    out_dim, in_dim = weight.shape
    assert in_dim == 5 * out_dim, "SeqCombineConcat expects in_dim == 5*out_dim"
    pack = _pack_factor(out_dim)

    w_t = jnp.asarray(weight).T                       # (K, N) MXU-friendly layout
    b = jnp.asarray(bias)
    if pack == 1:
        w_packed = w_t
        b_packed = b.reshape(1, out_dim)
    else:
        # Block-diagonal weight: packed_x[r] = concat(x[P*r], ..., x[P*r+P-1]),
        # so packed_x @ kron(I_P, W^T) reproduces each logical row exactly.
        eye = jnp.eye(pack, dtype=w_t.dtype)
        w_packed = jnp.kron(eye, w_t)                 # (P*K, P*N), block-diagonal
        b_packed = jnp.tile(b, pack).reshape(1, pack * out_dim)

    return dict(
        w_t=w_t, bias=b, w_packed=w_packed, b_packed=b_packed,
        pack=pack, out_dim=out_dim, in_dim=in_dim,
    )


def _linear_kernel(x_ref, w_ref, b_ref, o_ref):
    # One MXU matmul per packed-row tile + broadcasted bias add, all in VMEM.
    acc = jnp.dot(x_ref[...], w_ref[...], preferred_element_type=jnp.float32)
    acc = acc + b_ref[...]                 # (1, Np) broadcasts over the tile rows
    o_ref[...] = acc.astype(o_ref.dtype)


def seq_combine_concat(x, params, *, tm_packed=_TM_PACKED, core_parallel=False):
    """Pallas forward for SeqCombineConcat.

    x      : (..., 5 * output_dim)
    params : output of pack_seq_combine_params(weight, bias)
    returns: (..., output_dim)
    """
    out_dim = params["out_dim"]
    in_dim = params["in_dim"]
    pack = params["pack"]

    lead_shape = x.shape[:-1]
    assert x.shape[-1] == in_dim
    m = 1
    for d in lead_shape:
        m *= d

    if m == 0:
        return jnp.zeros((*lead_shape, out_dim), x.dtype)

    x2d = x.reshape(m, in_dim)

    if m < _SMALL_M:
        # Tiny problem: skip the custom-call boundary entirely.
        y2d = (x2d @ params["w_t"] + params["bias"]).astype(x.dtype)
        return y2d.reshape(*lead_shape, out_dim)

    # ---- lane-dense pack: (M, K) -> (M/P, P*K); free when M % P == 0 -------
    m_pad = _round_up(m, pack)
    if m_pad != m:
        x2d = jnp.pad(x2d, ((0, m_pad - m), (0, 0)))
    mp = m_pad // pack
    kp = pack * in_dim
    np_ = pack * out_dim
    xp = x2d.reshape(mp, kp)
    wp = params["w_packed"]
    bp = params["b_packed"]

    # Clamp the tile so medium-M problems still get >= _MIN_STEPS pipeline
    # steps to overlap DMA with the MXU, while staying sublane-aligned.
    tm = min(tm_packed, _round_up(pl.cdiv(mp, _MIN_STEPS), _ROW_ALIGN))
    tm = max(tm, 8)
    grid_m = pl.cdiv(mp, tm)

    x_bytes = jnp.dtype(x.dtype).itemsize
    w_bytes = jnp.dtype(wp.dtype).itemsize
    cost = pl.CostEstimate(
        flops=2 * mp * kp * np_,               # MXU work actually issued
        transcendentals=0,
        bytes_accessed=(mp * (kp + np_) * x_bytes
                        + (kp * np_ + np_) * w_bytes),
    )

    # v7x: CORE_PARALLEL guarantees the 2-TC split of the row axis; plain
    # "parallel" is the conservative default (measured no-op on v5e/v6e).
    dim_sem = (pltpu.CORE_PARALLEL,) if core_parallel else ("parallel",)

    out = pl.pallas_call(
        _linear_kernel,
        out_shape=jax.ShapeDtypeStruct((mp, np_), x.dtype),
        grid_spec=pltpu.PrefetchScalarGridSpec(
            num_scalar_prefetch=0,
            grid=(grid_m,),
            in_specs=[
                # x: streamed, one (tm, Kp) lane-dense tile per grid step.
                pl.BlockSpec((tm, kp), lambda i: (i, 0)),
                # weight / bias: same block every step -> VMEM-resident.
                pl.BlockSpec((kp, np_), lambda i: (0, 0)),
                pl.BlockSpec((1, np_), lambda i: (0, 0)),
            ],
            out_specs=pl.BlockSpec((tm, np_), lambda i: (i, 0)),
        ),
        compiler_params=pltpu.CompilerParams(
            dimension_semantics=dim_sem,
            vmem_limit_bytes=_VMEM_LIMIT,
        ),
        cost_estimate=cost,
    )(xp, wp, bp)

    # Unpack: (M/P, P*N) -> (M, N); drop the pad rows (if any).
    y2d = out.reshape(m_pad, out_dim)
    if m_pad != m:
        y2d = y2d[:m]
    return y2d.reshape(*lead_shape, out_dim)


if __name__ == "__main__":
    # output_dim = 32 -> input feature dim = 5 * 32 = 160.
    output_dim = 32
    in_dim = 5 * output_dim

    key = jax.random.PRNGKey(0)
    k_x1, k_x2, k_x3, k_w, k_b = jax.random.split(key, 5)

    # nn.Linear default init: U(-1/sqrt(in_features), 1/sqrt(in_features))
    bound = 1.0 / (in_dim ** 0.5)
    weight = jax.random.uniform(
        k_w, (output_dim, in_dim), jnp.float32, minval=-bound, maxval=bound
    )
    bias = jax.random.uniform(
        k_b, (output_dim,), jnp.float32, minval=-bound, maxval=bound
    )

    # Pack once at "init" (hoisted out of the per-call path).
    params = pack_seq_combine_params(weight, bias)

    # Case 1: module-sized tiny shape (batch=2, seq=8) -> XLA fallback path.
    x_small = jax.random.normal(k_x1, (2, 8, in_dim), jnp.float32)
    y_small = jax.block_until_ready(seq_combine_concat(x_small, params))
    ref_small = x_small @ weight.T + bias
    assert y_small.shape == (2, 8, output_dim)
    assert jnp.allclose(y_small, ref_small, atol=1e-5, rtol=1e-5)

    # Case 2: big enough for the packed Pallas path: m = 4*1280 = 5120 logical
    # rows -> 1280 packed rows, clamped tile = 384 -> 4 grid steps with a
    # partial last tile.
    x_big = jax.random.normal(k_x2, (4, 1280, in_dim), jnp.float32)
    y_big = jax.block_until_ready(seq_combine_concat(x_big, params))
    ref_big = x_big @ weight.T + bias
    assert y_big.shape == (4, 1280, output_dim)
    assert jnp.allclose(y_big, ref_big, atol=1e-4, rtol=1e-4)

    # Case 3: logical rows not divisible by the pack factor (exercises the
    # zero-row pad + unpack slice): m = 2*513 = 1026.
    x_rag = jax.random.normal(k_x3, (2, 513, in_dim), jnp.float32)
    y_rag = jax.block_until_ready(seq_combine_concat(x_rag, params))
    ref_rag = x_rag @ weight.T + bias
    assert y_rag.shape == (2, 513, output_dim)
    assert jnp.allclose(y_rag, ref_rag, atol=1e-4, rtol=1e-4)

    print("KERNEL_OK")
</pallas_src>

<mosaic_0001>
module attributes {stable_mosaic.version = 11 : i64} {
  func.func @_linear_kernel(%arg0: i32, %arg1: memref<384x640xf32, #tpu.memory_space<vmem>>, %arg2: memref<640x128xf32, #tpu.memory_space<vmem>>, %arg3: memref<1x128xf32, #tpu.memory_space<vmem>>, %arg4: memref<384x128xf32, #tpu.memory_space<vmem>>) attributes {dimension_semantics = [#tpu.dimension_semantics<parallel>], iteration_bounds = array<i64: 4>, scalar_prefetch = 0 : i64, scratch_operands = 0 : i64, tpu.core_type = #tpu.core_type<tc>, window_params = [{transform_indices = @transform_0, window_bounds = array<i64: 384, 640>}, {pipeline_mode = #tpu.pipeline_mode<synchronous>, transform_indices = @transform_1, window_bounds = array<i64: 640, 128>}, {pipeline_mode = #tpu.pipeline_mode<synchronous>, transform_indices = @transform_2, window_bounds = array<i64: 1, 128>}, {transform_indices = @transform_3, window_bounds = array<i64: 384, 128>}]} {
    %c0 = arith.constant 0 : index
    %c0_0 = arith.constant 0 : index
    %0 = vector.load %arg1[%c0, %c0_0] : memref<384x640xf32, #tpu.memory_space<vmem>>, vector<384x640xf32>
    %c0_1 = arith.constant 0 : index
    %c0_2 = arith.constant 0 : index
    %1 = vector.load %arg2[%c0_1, %c0_2] : memref<640x128xf32, #tpu.memory_space<vmem>>, vector<640x128xf32>
    %cst = arith.constant dense<0.000000e+00> : vector<384x128xf32>
    %2 = tpu.matmul %0, %1, %cst {dimension_numbers = #tpu.dot_dimension_numbers<[1], [0], [0], [1], [0, 0, 1, 1], [], []>} : vector<384x640xf32>, vector<640x128xf32>, vector<384x128xf32> -> vector<384x128xf32>
    %c0_3 = arith.constant 0 : index
    %c0_4 = arith.constant 0 : index
    %3 = vector.load %arg3[%c0_3, %c0_4] : memref<1x128xf32, #tpu.memory_space<vmem>>, vector<1x128xf32>
    %4 = vector.broadcast %3 : vector<1x128xf32> to vector<384x128xf32>
    %5 = arith.addf %2, %4 : vector<384x128xf32>
    %c0_5 = arith.constant 0 : index
    %c0_6 = arith.constant 0 : index
    %6 = vector.load %arg4[%c0_5, %c0_6] : memref<384x128xf32, #tpu.memory_space<vmem>>, vector<384x128xf32>
    tpu.vector_store %arg4[%c0_5, %c0_6], %5 {strides = array<i32>} : memref<384x128xf32, #tpu.memory_space<vmem>>, vector<384x128xf32>,
    return
  }
  func.func @transform_0(%arg0: i32) -> (i32, i32) {
    %c0_i32 = arith.constant 0 : i32
    %c0_i32_0 = arith.constant 0 : i32
    return %arg0, %c0_i32 : i32, i32
  }
  func.func @transform_1(%arg0: i32) -> (i32, i32) {
    %c0_i32 = arith.constant 0 : i32
    %c0_i32_0 = arith.constant 0 : i32
    %c0_i32_1 = arith.constant 0 : i32
    return %c0_i32, %c0_i32_0 : i32, i32
  }
  func.func @transform_2(%arg0: i32) -> (i32, i32) {
    %c0_i32 = arith.constant 0 : i32
    %c0_i32_0 = arith.constant 0 : i32
    %c0_i32_1 = arith.constant 0 : i32
    return %c0_i32, %c0_i32_0 : i32, i32
  }
  func.func @transform_3(%arg0: i32) -> (i32, i32) {
    %c0_i32 = arith.constant 0 : i32
    %c0_i32_0 = arith.constant 0 : i32
    return %arg0, %c0_i32 : i32, i32
  }
}

</mosaic_0001>

<llo_original>
// kernel: tpu_custom_call.1
$region0: #{tpu_custom_call.1}
  #allocation0 [shape = 'u32[]', space=smem, size = 0x4, offset = 0x4, fixed_abs, tag = 'smem constant byte address 0x4 - core index']
  #allocation1 [shape = 'u32[72,128]{1,0:T(1,128)}', space=vmem, size = 0x9000, scoped, tag = 'internal scratch']
  %s0 = inlined_call_operand.hbm [shape: f32[1280,640], index: 0, kind: input, shape index: {}]
  %s1 = inlined_call_operand.hbm [shape: f32[640,128], index: 1, kind: input, shape index: {}]
  %s2 = inlined_call_operand.hbm [shape: f32[1,128], index: 2, kind: input, shape index: {}]
  %s3 = inlined_call_operand.hbm [shape: f32[1280,128], index: 3, kind: output, shape index: {}]
  %s4 = sld [smem:[#allocation0]]
  $region57: #{tpu_custom_call.1} parent=0
    _
  %s6 = ssub.s32 1, %s4
  %s7 = scalar_select 0, %s6, %s4
  $region1: #{tpu_custom_call.1} parent=0
    #allocation2 [shape = 'u8[1966080]{0}', space=vmem, size = 0x1e0000, scoped, tag = 'input window, operand 0']
    #allocation3 [shape = 's32[2]{0}', space=sflag, size = 0x8, scoped, tag = 'scoped memory for tpu_custom_call.1']
    #allocation4 [shape = 's32[2]{0}', space=sflag, size = 0x8, scoped, tag = 'scoped memory for tpu_custom_call.1']
    #allocation5 [shape = 'u8[327680]{0}', space=vmem, size = 0x50000, scoped, tag = 'input window, operand 1, single buffered']
    #allocation6 [shape = 's32[1]{0}', space=sflag, size = 0x4, scoped, tag = 'scoped memory for tpu_custom_call.1']
    #allocation7 [shape = 'u8[512]{0}', space=vmem, size = 0x400, scoped, tag = 'input window, operand 2, single buffered']
    #allocation8 [shape = 'u8[393216]{0}', space=vmem, size = 0x60000, scoped, tag = 'output window, operand 0']
    %8 = vsyncpa [#allocation3], 0
    %s9 = scalar_lea.sflag [#allocation3], 1
    %10 = vsyncpa %s9, 0
    %11 = vsyncpa [#allocation6], 0
    %12 = vsyncpa [#allocation4], 0
    %s13 = scalar_lea.sflag [#allocation4], 1
    %14 = vsyncpa %s13, 0
    loop: start=0, step=1, limit=6
    $region2: #{tpu_custom_call.1} parent=1 // loop_pre_header
      _
    $region3: #{tpu_custom_call.1} parent=1 // loop_header
      %s16 = sphi 0, %s20
      %p17 = scmp.ge.s32.totalorder %s16, 6
      %s26 = sphi 0, %s28
      %s29 = sphi 0, %s26
      %s30 = sphi 0, %s29
      %s46 = sphi 0, %s30
      %s50 = sphi 0, %s50
      %s52 = sphi 0, %s50
      %s53 = sphi 0, %s52
      %s67 = sphi 0, %s53
      %s71 = sphi 0, %s71
      %s73 = sphi 0, %s71
      %s74 = sphi 0, %s73
      %s88 = sphi 0, %s74
      %s94 = sphi 0, %s96
      %s97 = sphi 0, %s94
      %s98 = sphi 0, %s97
      %s114 = sphi 0, %s98
    $region4: #{tpu_custom_call.1} parent=1 // loop_header_branch
      %19 = sbr.rel (%p17) target = $region8
    $region5: #{tpu_custom_call.1} parent=1 // loop_body
      %s21 = ssub.s32 %s16, 1
      %s22 = ssub.s32 %s16, 2
      %s23 = sadd.s32 %s16, 1
      %s24 = ssub.s32 %s16, %s23
      %p25 = scmp.eq.s32.totalorder %s24, 0
      %s27 = sadd.s32 %s26, 1
      %s28 = scalar_select %p25, %s26, %s27
      %p31 = pneg %p25
      %p32 = scmp.eq.s32.totalorder %s16, 3
      %p33 = por %p31, %p32
      %p34 = scmp.ne.s32.totalorder %s26, %s29
      %p35 = scmp.eq.s32.totalorder %s16, 0
      %p36 = por %p34, %p35
      %p37 = scmp.ne.s32.totalorder %s26, %s29
      %p38 = scmp.eq.s32.totalorder %s21, 3
      %p39 = por %p37, %p38
      %p40 = scmp.ne.s32.totalorder %s29, %s30
      %p41 = scmp.eq.s32.totalorder %s21, 0
      %p42 = por %p40, %p41
      %p43 = scmp.ne.s32.totalorder %s29, %s30
      %p44 = scmp.eq.s32.totalorder %s22, 3
      %p45 = por %p43, %p44
      %p47 = scmp.ne.s32.totalorder %s30, %s46
      %p48 = scmp.eq.s32.totalorder %s22, 0
      %p49 = por %p47, %p48
      %s51 = sadd.s32 %s50, 1
      %p54 = scmp.eq.s32.totalorder %s16, 3
      %p55 = scmp.ne.s32.totalorder %s50, %s52
      %p56 = scmp.eq.s32.totalorder %s16, 0
      %p57 = por %p55, %p56
      %p58 = scmp.ne.s32.totalorder %s50, %s52
      %p59 = scmp.eq.s32.totalorder %s21, 3
      %p60 = por %p58, %p59
      %p61 = scmp.ne.s32.totalorder %s52, %s53
      %p62 = scmp.eq.s32.totalorder %s21, 0
      %p63 = por %p61, %p62
      %p64 = scmp.ne.s32.totalorder %s52, %s53
      %p65 = scmp.eq.s32.totalorder %s22, 3
      %p66 = por %p64, %p65
      %p68 = scmp.ne.s32.totalorder %s53, %s67
      %p69 = scmp.eq.s32.totalorder %s22, 0
      %p70 = por %p68, %p69
      %s72 = sadd.s32 %s71, 1
      %p75 = scmp.eq.s32.totalorder %s16, 3
      %p76 = scmp.ne.s32.totalorder %s71, %s73
      %p77 = scmp.eq.s32.totalorder %s16, 0
      %p78 = por %p76, %p77
      %p79 = scmp.ne.s32.totalorder %s71, %s73
      %p80 = scmp.eq.s32.totalorder %s21, 3
      %p81 = por %p79, %p80
      %p82 = scmp.ne.s32.totalorder %s73, %s74
      %p83 = scmp.eq.s32.totalorder %s21, 0
      %p84 = por %p82, %p83
      %p85 = scmp.ne.s32.totalorder %s73, %s74
      %p86 = scmp.eq.s32.totalorder %s22, 3
      %p87 = por %p85, %p86
      %p89 = scmp.ne.s32.totalorder %s74, %s88
      %p90 = scmp.eq.s32.totalorder %s22, 0
      %p91 = por %p89, %p90
      %s92 = ssub.s32 %s16, %s23
      %p93 = scmp.eq.s32.totalorder %s92, 0
      %s95 = sadd.s32 %s94, 1
      %s96 = scalar_select %p93, %s94, %s95
      %p99 = pneg %p93
      %p100 = scmp.eq.s32.totalorder %s16, 3
      %p101 = por %p99, %p100
      %p102 = scmp.ne.s32.totalorder %s94, %s97
      %p103 = scmp.eq.s32.totalorder %s16, 0
      %p104 = por %p102, %p103
      %p105 = scmp.ne.s32.totalorder %s94, %s97
      %p106 = scmp.eq.s32.totalorder %s21, 3
      %p107 = por %p105, %p106
      %p108 = scmp.ne.s32.totalorder %s97, %s98
      %p109 = scmp.eq.s32.totalorder %s21, 0
      %p110 = por %p108, %p109
      %p111 = scmp.ne.s32.totalorder %s97, %s98
      %p112 = scmp.eq.s32.totalorder %s22, 3
      %p113 = por %p111, %p112
      %p115 = scmp.ne.s32.totalorder %s98, %s114
      %p116 = scmp.eq.s32.totalorder %s22, 0
      %p117 = por %p115, %p116
      %p118 = scmp.le.s32.totalorder 1, %s16
      %p119 = scmp.lt.s32.totalorder %s16, 5
      %p120 = pnand %p118, %p119
      %p121 = pneg %p120
      // Predicated region
      $region9: #{tpu_custom_call.1} parent=5 // pred_check
        _
      $region10: #{tpu_custom_call.1} parent=5 // pred_check_branch
        %123 = sbr.rel (%p120) target = $region12
      $region11: #{tpu_custom_call.1} parent=5 // pred_region
        %s124 = ssub.s32 %s16, 1
        // Predicated region
        $region13: #{tpu_custom_call.1} parent=11 // pred_check
          %p125 = pneg %p63
        $region14: #{tpu_custom_call.1} parent=11 // pred_check_branch
          %127 = sbr.rel (%p125) target = $region16
        $region15: #{tpu_custom_call.1} parent=11 // pred_region
          %129 = vsyncadd [#allocation6], 0
          %s130 = sshll.u32 %s1, 4
          %s131 = int_to_ptr.hbm [resolvable:$true] %s130
          %s132 = sshll.u32 [#allocation5], 4
          %s133 = int_to_ptr.vmem [resolvable:$true] %s132
          %138 = dma.hbm_to_vmem [thread:$0]  %s131, 10240, %s133, [#allocation6], 128, 128, 8
        $region16: #{tpu_custom_call.1} parent=11 // pred_fallthru
          _
        // Predicated region
        $region17: #{tpu_custom_call.1} parent=11 // pred_check
          %p139 = pneg %p84
        $region18: #{tpu_custom_call.1} parent=11 // pred_check_branch
          %141 = sbr.rel (%p139) target = $region20
        $region19: #{tpu_custom_call.1} parent=11 // pred_region
          %143 = vsyncadd [#allocation6], 0
          %s145 = sshll.u32 %s2, 4
          %s146 = int_to_ptr.hbm [resolvable:$true] %s145
          %s147 = sshll.u32 [#allocation7], 4
          %s148 = int_to_ptr.vmem [resolvable:$true] %s147
          %150 = dma.hbm_to_vmem [thread:$0]  %s146, 16, %s148, [#allocation6]
        $region20: #{tpu_custom_call.1} parent=11 // pred_fallthru
          _
      $region12: #{tpu_custom_call.1} parent=5 // pred_fallthru
        _
      %p151 = scmp.lt.s32.totalorder %s16, 4
      // Predicated region
      $region21: #{tpu_custom_call.1} parent=5 // pred_check
        %p152 = pneg %p151
      $region22: #{tpu_custom_call.1} parent=5 // pred_check_branch
        %154 = sbr.rel (%p152) target = $region24
      $region23: #{tpu_custom_call.1} parent=5 // pred_region
        // Predicated region
        $region25: #{tpu_custom_call.1} parent=23 // pred_check
          %p155 = pneg %p36
        $region26: #{tpu_custom_call.1} parent=23 // pred_check_branch
          %157 = sbr.rel (%p155) target = $region28
        $region27: #{tpu_custom_call.1} parent=23 // pred_region
          %s158 = sand.u32 %s26, 1
          %s159 = scalar_lea.sflag [#allocation3], %s158
          %s160 = sand.u32 %s26, 1
          %s161 = smul.addr %s160, 1920
          %s162 = scalar_lea.vmem [#allocation2], %s161
          %s163 = smul.u32 48, %s16
          %s164 = ssub.s32 160, %s163
          %p165 = scmp.lt.s32.totalorder %s164, 48
          %s166 = scalar_select %p165, %s164, 48
          %s167 = smul.u32 8, %s166
          %s168 = smul.u32 %s167, 5
          %s169 = ssub.s32 1920, %s168
          %s170 = sshll.u32 %s169, 4
          %171 = vsyncadd %s159, %s170
          %p172 = scmp.ne.s32.totalorder 0, %s168
          %s173 = smul.addr %s163, 5
          %s174 = smul.addr %s173, 8
          %s175 = scalar_lea.hbm %s0, %s174
          %s176 = smul.u32 40, %s166
          %s177 = sshll.u32 %s175, 4
          %s178 = int_to_ptr.hbm [resolvable:$true] %s177
          %s179 = sshll.u32 %s162, 4
          %s180 = int_to_ptr.vmem [resolvable:$true] %s179
          %s181 = sshll.u32 %s176, 4
          %185 = dma.hbm_to_vmem [thread:$0]  (%p172), %s178, %s181, %s180, %s159, 640, 640, 40
        $region28: #{tpu_custom_call.1} parent=23 // pred_fallthru
          _
      $region24: #{tpu_custom_call.1} parent=5 // pred_fallthru
        _
      %p186 = scmp.le.s32.totalorder 1, %s16
      %p187 = scmp.lt.s32.totalorder %s16, 5
      %p188 = pnand %p186, %p187
      %p189 = pneg %p188
      // Predicated region
      $region29: #{tpu_custom_call.1} parent=5 // pred_check
        _
      $region30: #{tpu_custom_call.1} parent=5 // pred_check_branch
        %191 = sbr.rel (%p188) target = $region32
      $region31: #{tpu_custom_call.1} parent=5 // pred_region
        %s192 = ssub.s32 %s16, 1
        %s193 = sand.u32 %s29, 1
        %s194 = scalar_lea.sflag [#allocation3], %s193
        %s195 = sand.u32 %s29, 1
        %s196 = smul.addr %s195, 1920
        %s197 = scalar_lea.vmem [#allocation2], %s196
        // Predicated region
        $region33: #{tpu_custom_call.1} parent=31 // pred_check
          %p198 = pneg %p42
        $region34: #{tpu_custom_call.1} parent=31 // pred_check_branch
          %200 = sbr.rel (%p198) target = $region36
        $region35: #{tpu_custom_call.1} parent=31 // pred_region
          %202 = dma.done %s194, 30720
        $region36: #{tpu_custom_call.1} parent=31 // pred_fallthru
          _
        // Predicated region
        $region37: #{tpu_custom_call.1} parent=31 // pred_check
          %p203 = pneg %p63
        $region38: #{tpu_custom_call.1} parent=31 // pred_check_branch
          %205 = sbr.rel (%p203) target = $region40
        $region39: #{tpu_custom_call.1} parent=31 // pred_region
          %207 = dma.done [#allocation6], 10240
        $region40: #{tpu_custom_call.1} parent=31 // pred_fallthru
          _
        // Predicated region
        $region41: #{tpu_custom_call.1} parent=31 // pred_check
          %p208 = pneg %p84
        $region42: #{tpu_custom_call.1} parent=31 // pred_check_branch
          %210 = sbr.rel (%p208) target = $region44
        $region43: #{tpu_custom_call.1} parent=31 // pred_region
          %212 = dma.done [#allocation6], 16
        $region44: #{tpu_custom_call.1} parent=31 // pred_fallthru
          _
        %s213 = sand.u32 %s29, 1
        %s214 = scalar_lea.sflag [#allocation3], %s213
        %s215 = sand.u32 %s29, 1
        %s216 = smul.addr %s215, 1920
        %s217 = scalar_lea.vmem [#allocation2], %s216
        %p218 = pneg %p42
        %p219 = pneg %p39
        %p220 = pneg %p63
        %p221 = pneg %p60
        %p222 = pneg %p84
        %p223 = pneg %p81
        %p224 = pneg %p110
        %p225 = pneg %p107
        %s226 = sand.u32 %s97, 1
        %s227 = scalar_lea.sflag [#allocation4], %s226
        %s228 = sand.u32 %s97, 1
        %s229 = smul.addr %s228, 384
        %s230 = scalar_lea.vmem [#allocation8], %s229
        %s231 = smul.u32 48, %s21
        %s232 = ssub.s32 160, %s231
        %p233 = scmp.lt.s32.totalorder %s232, 48
        %s234 = scalar_select %p233, %s232, 48
        %s235 = smul.u32 8, %s234
        %s236 = smul.u32 %s235, 5
        %s237 = smul.u32 48, %s21
        %s238 = ssub.s32 160, %s237
        %p239 = scmp.lt.s32.totalorder %s238, 48
        %s240 = scalar_select %p239, %s238, 48
        %s241 = smul.u32 8, %s240
        %v242 = vld [vmem:[%s197] sm:$0xff]
        %v243 = vld [vmem:[%s197 + $0x8] sm:$0xff]
        %v244 = vld [vmem:[%s197 + $0x10] sm:$0xff]
        %v245 = vld [vmem:[%s197 + $0x18] sm:$0xff]
        %v246 = vld [vmem:[%s197 + $0x20] sm:$0xff]
        %v247 = vld [vmem:[%s197 + $0x28] sm:$0xff]
        %v248 = vld [vmem:[%s197 + $0x30] sm:$0xff]
        %v249 = vld [vmem:[%s197 + $0x38] sm:$0xff]
        %v250 = vld [vmem:[%s197 + $0x40] sm:$0xff]
        %v251 = vld [vmem:[%s197 + $0x48] sm:$0xff]
        %v252 = vld [vmem:[%s197 + $0x50] sm:$0xff]
        %v253 = vld [vmem:[%s197 + $0x58] sm:$0xff]
        %v254 = vld [vmem:[%s197 + $0x60] sm:$0xff]
        %v255 = vld [vmem:[%s197 + $0x68] sm:$0xff]
        %v256 = vld [vmem:[%s197 + $0x70] sm:$0xff]
        %v257 = vld [vmem:[%s197 + $0x78] sm:$0xff]
        %v258 = vld [vmem:[%s197 + $0x80] sm:$0xff]
        %v259 = vld [vmem:[%s197 + $0x88] sm:$0xff]
        %v260 = vld [vmem:[%s197 + $0x90] sm:$0xff]
        %v261 = vld [vmem:[%s197 + $0x98] sm:$0xff]
        %v262 = vld [vmem:[%s197 + $0xa0] sm:$0xff]
        %v263 = vld [vmem:[%s197 + $0xa8] sm:$0xff]
        %v264 = vld [vmem:[%s197 + $0xb0] sm:$0xff]
        %v265 = vld [vmem:[%s197 + $0xb8] sm:$0xff]
        %v266 = vld [vmem:[%s197 + $0xc0] sm:$0xff]
        %v267 = vld [vmem:[%s197 + $0xc8] sm:$0xff]
        %v268 = vld [vmem:[%s197 + $0xd0] sm:$0xff]
        %v269 = vld [vmem:[%s197 + $0xd8] sm:$0xff]
        %v270 = vld [vmem:[%s197 + $0xe0] sm:$0xff]
        %v271 = vld [vmem:[%s197 + $0xe8] sm:$0xff]
        %v272 = vld [vmem:[%s197 + $0xf0] sm:$0xff]
        %v273 = vld [vmem:[%s197 + $0xf8] sm:$0xff]
        %v274 = vld [vmem:[%s197 + $0x100] sm:$0xff]
        %v275 = vld [vmem:[%s197 + $0x108] sm:$0xff]
        %v276 = vld [vmem:[%s197 + $0x110] sm:$0xff]
        %v277 = vld [vmem:[%s197 + $0x118] sm:$0xff]
        %v278 = vld [vmem:[%s197 + $0x120] sm:$0xff]
        %v279 = vld [vmem:[%s197 + $0x128] sm:$0xff]
        %v280 = vld [vmem:[%s197 + $0x130] sm:$0xff]
        %v281 = vld [vmem:[%s197 + $0x138] sm:$0xff]
        %v282 = vld [vmem:[%s197 + $0x140] sm:$0xff]
        %v283 = vld [vmem:[%s197 + $0x148] sm:$0xff]
        %v284 = vld [vmem:[%s197 + $0x150] sm:$0xff]
        %v285 = vld [vmem:[%s197 + $0x158] sm:$0xff]
        %v286 = vld [vmem:[%s197 + $0x160] sm:$0xff]
        %v287 = vld [vmem:[%s197 + $0x168] sm:$0xff]
        %v288 = vld [vmem:[%s197 + $0x170] sm:$0xff]
        %v289 = vld [vmem:[%s197 + $0x178] sm:$0xff]
        %v290 = vld [vmem:[%s197 + $0x180] sm:$0xff]
        %v291 = vld [vmem:[%s197 + $0x188] sm:$0xff]
        %v292 = vld [vmem:[%s197 + $0x190] sm:$0xff]
        %v293 = vld [vmem:[%s197 + $0x198] sm:$0xff]
        %v294 = vld [vmem:[%s197 + $0x1a0] sm:$0xff]
        %v295 = vld [vmem:[%s197 + $0x1a8] sm:$0xff]
        %v296 = vld [vmem:[%s197 + $0x1b0] sm:$0xff]
        %v297 = vld [vmem:[%s197 + $0x1b8] sm:$0xff]
        %v298 = vld [vmem:[%s197 + $0x1c0] sm:$0xff]
        %v299 = vld [vmem:[%s197 + $0x1c8] sm:$0xff]
        %v300 = vld [vmem:[%s197 + $0x1d0] sm:$0xff]
        %v301 = vld [vmem:[%s197 + $0x1d8] sm:$0xff]
        %v302 = vld [vmem:[%s197 + $0x1e0] sm:$0xff]
        %v303 = vld [vmem:[%s197 + $0x1e8] sm:$0xff]
        %v304 = vld [vmem:[%s197 + $0x1f0] sm:$0xff]
        %v305 = vld [vmem:[%s197 + $0x1f8] sm:$0xff]
        %v306 = vld [vmem:[%s197 + $0x200] sm:$0xff]
        %v307 = vld [vmem:[%s197 + $0x208] sm:$0xff]
        %v308 = vld [vmem:[%s197 + $0x210] sm:$0xff]
        %v309 = vld [vmem:[%s197 + $0x218] sm:$0xff]
        %v310 = vld [vmem:[%s197 + $0x220] sm:$0xff]
        %v311 = vld [vmem:[%s197 + $0x228] sm:$0xff]
        %v312 = vld [vmem:[%s197 + $0x230] sm:$0xff]
        %v313 = vld [vmem:[%s197 + $0x238] sm:$0xff]
        %v314 = vld [vmem:[%s197 + $0x240] sm:$0xff]
        %v315 = vld [vmem:[%s197 + $0x248] sm:$0xff]
        %v316 = vld [vmem:[%s197 + $0x250] sm:$0xff]
        %v317 = vld [vmem:[%s197 + $0x258] sm:$0xff]
        %v318 = vld [vmem:[%s197 + $0x260] sm:$0xff]
        %v319 = vld [vmem:[%s197 + $0x268] sm:$0xff]
        %v320 = vld [vmem:[%s197 + $0x270] sm:$0xff]
        %v321 = vld [vmem:[%s197 + $0x278] sm:$0xff]
        %v322 = vld [vmem:[%s197 + $0x280] sm:$0xff]
        %v323 = vld [vmem:[%s197 + $0x288] sm:$0xff]
        %v324 = vld [vmem:[%s197 + $0x290] sm:$0xff]
        %v325 = vld [vmem:[%s197 + $0x298] sm:$0xff]
        %v326 = vld [vmem:[%s197 + $0x2a0] sm:$0xff]
        %v327 = vld [vmem:[%s197 + $0x2a8] sm:$0xff]
        %v328 = vld [vmem:[%s197 + $0x2b0] sm:$0xff]
        %v329 = vld [vmem:[%s197 + $0x2b8] sm:$0xff]
        %v330 = vld [vmem:[%s197 + $0x2c0] sm:$0xff]
        %v331 = vld [vmem:[%s197 + $0x2c8] sm:$0xff]
        %v332 = vld [vmem:[%s197 + $0x2d0] sm:$0xff]
        %v333 = vld [vmem:[%s197 + $0x2d8] sm:$0xff]
        %v334 = vld [vmem:[%s197 + $0x2e0] sm:$0xff]
        %v335 = vld [vmem:[%s197 + $0x2e8] sm:$0xff]
        %v336 = vld [vmem:[%s197 + $0x2f0] sm:$0xff]
        %v337 = vld [vmem:[%s197 + $0x2f8] sm:$0xff]
        %v338 = vld [vmem:[%s197 + $0x300] sm:$0xff]
        %v339 = vld [vmem:[%s197 + $0x308] sm:$0xff]
        %v340 = vld [vmem:[%s197 + $0x310] sm:$0xff]
        %v341 = vld [vmem:[%s197 + $0x318] sm:$0xff]
        %v342 = vld [vmem:[%s197 + $0x320] sm:$0xff]
        %v343 = vld [vmem:[%s197 + $0x328] sm:$0xff]
        %v344 = vld [vmem:[%s197 + $0x330] sm:$0xff]
        %v345 = vld [vmem:[%s197 + $0x338] sm:$0xff]
        %v346 = vld [vmem:[%s197 + $0x340] sm:$0xff]
        %v347 = vld [vmem:[%s197 + $0x348] sm:$0xff]
        %v348 = vld [vmem:[%s197 + $0x350] sm:$0xff]
        %v349 = vld [vmem:[%s197 + $0x358] sm:$0xff]
        %v350 = vld [vmem:[%s197 + $0x360] sm:$0xff]
        %v351 = vld [vmem:[%s197 + $0x368] sm:$0xff]
        %v352 = vld [vmem:[%s197 + $0x370] sm:$0xff]
        %v353 = vld [vmem:[%s197 + $0x378] sm:$0xff]
        %v354 = vld [vmem:[%s197 + $0x380] sm:$0xff]
        %v355 = vld [vmem:[%s197 + $0x388] sm:$0xff]
        %v356 = vld [vmem:[%s197 + $0x390] sm:$0xff]
        %v357 = vld [vmem:[%s197 + $0x398] sm:$0xff]
        %v358 = vld [vmem:[%s197 + $0x3a0] sm:$0xff]
        %v359 = vld [vmem:[%s197 + $0x3a8] sm:$0xff]
        %v360 = vld [vmem:[%s197 + $0x3b0] sm:$0xff]
        %v361 = vld [vmem:[%s197 + $0x3b8] sm:$0xff]
        %v362 = vld [vmem:[%s197 + $0x3c0] sm:$0xff]
        %v363 = vld [vmem:[%s197 + $0x3c8] sm:$0xff]
        %v364 = vld [vmem:[%s197 + $0x3d0] sm:$0xff]
        %v365 = vld [vmem:[%s197 + $0x3d8] sm:$0xff]
        %v366 = vld [vmem:[%s197 + $0x3e0] sm:$0xff]
        %v367 = vld [vmem:[%s197 + $0x3e8] sm:$0xff]
        %v368 = vld [vmem:[%s197 + $0x3f0] sm:$0xff]
        %v369 = vld [vmem:[%s197 + $0x3f8] sm:$0xff]
        %v370 = vld [vmem:[%s197 + $0x400] sm:$0xff]
        %v371 = vld [vmem:[%s197 + $0x408] sm:$0xff]
        %v372 = vld [vmem:[%s197 + $0x410] sm:$0xff]
        %v373 = vld [vmem:[%s197 + $0x418] sm:$0xff]
        %v374 = vld [vmem:[%s197 + $0x420] sm:$0xff]
        %v375 = vld [vmem:[%s197 + $0x428] sm:$0xff]
        %v376 = vld [vmem:[%s197 + $0x430] sm:$0xff]
        %v377 = vld [vmem:[%s197 + $0x438] sm:$0xff]
        %v378 = vld [vmem:[%s197 + $0x440] sm:$0xff]
        %v379 = vld [vmem:[%s197 + $0x448] sm:$0xff]
        %v380 = vld [vmem:[%s197 + $0x450] sm:$0xff]
        %v381 = vld [vmem:[%s197 + $0x458] sm:$0xff]
        %v382 = vld [vmem:[%s197 + $0x460] sm:$0xff]
        %v383 = vld [vmem:[%s197 + $0x468] sm:$0xff]
        %v384 = vld [vmem:[%s197 + $0x470] sm:$0xff]
        %v385 = vld [vmem:[%s197 + $0x478] sm:$0xff]
        %v386 = vld [vmem:[%s197 + $0x480] sm:$0xff]
        %v387 = vld [vmem:[%s197 + $0x488] sm:$0xff]
        %v388 = vld [vmem:[%s197 + $0x490] sm:$0xff]
        %v389 = vld [vmem:[%s197 + $0x498] sm:$0xff]
        %v390 = vld [vmem:[%s197 + $0x4a0] sm:$0xff]
        %v391 = vld [vmem:[%s197 + $0x4a8] sm:$0xff]
        %v392 = vld [vmem:[%s197 + $0x4b0] sm:$0xff]
        %v393 = vld [vmem:[%s197 + $0x4b8] sm:$0xff]
        %v394 = vld [vmem:[%s197 + $0x4c0] sm:$0xff]
        %v395 = vld [vmem:[%s197 + $0x4c8] sm:$0xff]
        %v396 = vld [vmem:[%s197 + $0x4d0] sm:$0xff]
        %v397 = vld [vmem:[%s197 + $0x4d8] sm:$0xff]
        %v398 = vld [vmem:[%s197 + $0x4e0] sm:$0xff]
        %v399 = vld [vmem:[%s197 + $0x4e8] sm:$0xff]
        %v400 = vld [vmem:[%s197 + $0x4f0] sm:$0xff]
        %v401 = vld [vmem:[%s197 + $0x4f8] sm:$0xff]
        %v402 = vld [vmem:[%s197 + $0x500] sm:$0xff]
        %v403 = vld [vmem:[%s197 + $0x508] sm:$0xff]
        %v404 = vld [vmem:[%s197 + $0x510] sm:$0xff]
        %v405 = vld [vmem:[%s197 + $0x518] sm:$0xff]
        %v406 = vld [vmem:[%s197 + $0x520] sm:$0xff]
        %v407 = vld [vmem:[%s197 + $0x528] sm:$0xff]
        %v408 = vld [vmem:[%s197 + $0x530] sm:$0xff]
        %v409 = vld [vmem:[%s197 + $0x538] sm:$0xff]
        %v410 = vld [vmem:[%s197 + $0x540] sm:$0xff]
        %v411 = vld [vmem:[%s197 + $0x548] sm:$0xff]
        %v412 = vld [vmem:[%s197 + $0x550] sm:$0xff]
        %v413 = vld [vmem:[%s197 + $0x558] sm:$0xff]
        %v414 = vld [vmem:[%s197 + $0x560] sm:$0xff]
        %v415 = vld [vmem:[%s197 + $0x568] sm:$0xff]
        %v416 = vld [vmem:[%s197 + $0x570] sm:$0xff]
        %v417 = vld [vmem:[%s197 + $0x578] sm:$0xff]
        %v418 = vld [vmem:[%s197 + $0x580] sm:$0xff]
        %v419 = vld [vmem:[%s197 + $0x588] sm:$0xff]
        %v420 = vld [vmem:[%s197 + $0x590] sm:$0xff]
        %v421 = vld [vmem:[%s197 + $0x598] sm:$0xff]
        %v422 = vld [vmem:[%s197 + $0x5a0] sm:$0xff]
        %v423 = vld [vmem:[%s197 + $0x5a8] sm:$0xff]
        %v424 = vld [vmem:[%s197 + $0x5b0] sm:$0xff]
        %v425 = vld [vmem:[%s197 + $0x5b8] sm:$0xff]
        %v426 = vld [vmem:[%s197 + $0x5c0] sm:$0xff]
        %v427 = vld [vmem:[%s197 + $0x5c8] sm:$0xff]
        %v428 = vld [vmem:[%s197 + $0x5d0] sm:$0xff]
        %v429 = vld [vmem:[%s197 + $0x5d8] sm:$0xff]
        %v430 = vld [vmem:[%s197 + $0x5e0] sm:$0xff]
        %v431 = vld [vmem:[%s197 + $0x5e8] sm:$0xff]
        %v432 = vld [vmem:[%s197 + $0x5f0] sm:$0xff]
        %v433 = vld [vmem:[%s197 + $0x5f8] sm:$0xff]
        %v434 = vld [vmem:[%s197 + $0x600] sm:$0xff]
        %v435 = vld [vmem:[%s197 + $0x608] sm:$0xff]
        %v436 = vld [vmem:[%s197 + $0x610] sm:$0xff]
        %v437 = vld [vmem:[%s197 + $0x618] sm:$0xff]
        %v438 = vld [vmem:[%s197 + $0x620] sm:$0xff]
        %v439 = vld [vmem:[%s197 + $0x628] sm:$0xff]
        %v440 = vld [vmem:[%s197 + $0x630] sm:$0xff]
        %v441 = vld [vmem:[%s197 + $0x638] sm:$0xff]
        %v442 = vld [vmem:[%s197 + $0x640] sm:$0xff]
        %v443 = vld [vmem:[%s197 + $0x648] sm:$0xff]
        %v444 = vld [vmem:[%s197 + $0x650] sm:$0xff]
        %v445 = vld [vmem:[%s197 + $0x658] sm:$0xff]
        %v446 = vld [vmem:[%s197 + $0x660] sm:$0xff]
        %v447 = vld [vmem:[%s197 + $0x668] sm:$0xff]
        %v448 = vld [vmem:[%s197 + $0x670] sm:$0xff]
        %v449 = vld [vmem:[%s197 + $0x678] sm:$0xff]
        %v450 = vld [vmem:[%s197 + $0x680] sm:$0xff]
        %v451 = vld [vmem:[%s197 + $0x688] sm:$0xff]
        %v452 = vld [vmem:[%s197 + $0x690] sm:$0xff]
        %v453 = vld [vmem:[%s197 + $0x698] sm:$0xff]
        %v454 = vld [vmem:[%s197 + $0x6a0] sm:$0xff]
        %v455 = vld [vmem:[%s197 + $0x6a8] sm:$0xff]
        %v456 = vld [vmem:[%s197 + $0x6b0] sm:$0xff]
        %v457 = vld [vmem:[%s197 + $0x6b8] sm:$0xff]
        %v458 = vld [vmem:[%s197 + $0x6c0] sm:$0xff]
        %v459 = vld [vmem:[%s197 + $0x6c8] sm:$0xff]
        %v460 = vld [vmem:[%s197 + $0x6d0] sm:$0xff]
        %v461 = vld [vmem:[%s197 + $0x6d8] sm:$0xff]
        %v462 = vld [vmem:[%s197 + $0x6e0] sm:$0xff]
        %v463 = vld [vmem:[%s197 + $0x6e8] sm:$0xff]
        %v464 = vld [vmem:[%s197 + $0x6f0] sm:$0xff]
        %v465 = vld [vmem:[%s197 + $0x6f8] sm:$0xff]
        %v466 = vld [vmem:[%s197 + $0x700] sm:$0xff]
        %v467 = vld [vmem:[%s197 + $0x708] sm:$0xff]
        %v468 = vld [vmem:[%s197 + $0x710] sm:$0xff]
        %v469 = vld [vmem:[%s197 + $0x718] sm:$0xff]
        %v470 = vld [vmem:[%s197 + $0x720] sm:$0xff]
        %v471 = vld [vmem:[%s197 + $0x728] sm:$0xff]
        %v472 = vld [vmem:[%s197 + $0x730] sm:$0xff]
        %v473 = vld [vmem:[%s197 + $0x738] sm:$0xff]
        %v474 = vld [vmem:[%s197 + $0x740] sm:$0xff]
        %v475 = vld [vmem:[%s197 + $0x748] sm:$0xff]
        %v476 = vld [vmem:[%s197 + $0x750] sm:$0xff]
        %v477 = vld [vmem:[%s197 + $0x758] sm:$0xff]
        %v478 = vld [vmem:[%s197 + $0x760] sm:$0xff]
        %v479 = vld [vmem:[%s197 + $0x768] sm:$0xff]
        %v480 = vld [vmem:[%s197 + $0x770] sm:$0xff]
        %v481 = vld [vmem:[%s197 + $0x778] sm:$0xff]
        %v482 = vld [vmem:[#allocation5] sm:$0xff]
        %v483 = vld [vmem:[#allocation5 + $0x8] sm:$0xff]
        %v484 = vld [vmem:[#allocation5 + $0x10] sm:$0xff]
        %v485 = vld [vmem:[#allocation5 + $0x18] sm:$0xff]
        %v486 = vld [vmem:[#allocation5 + $0x20] sm:$0xff]
        %v487 = vld [vmem:[#allocation5 + $0x28] sm:$0xff]
        %v488 = vld [vmem:[#allocation5 + $0x30] sm:$0xff]
        %v489 = vld [vmem:[#allocation5 + $0x38] sm:$0xff]
        %v490 = vld [vmem:[#allocation5 + $0x40] sm:$0xff]
        %v491 = vld [vmem:[#allocation5 + $0x48] sm:$0xff]
        %v492 = vld [vmem:[#allocation5 + $0x50] sm:$0xff]
        %v493 = vld [vmem:[#allocation5 + $0x58] sm:$0xff]
        %v494 = vld [vmem:[#allocation5 + $0x60] sm:$0xff]
        %v495 = vld [vmem:[#allocation5 + $0x68] sm:$0xff]
        %v496 = vld [vmem:[#allocation5 + $0x70] sm:$0xff]
        %v497 = vld [vmem:[#allocation5 + $0x78] sm:$0xff]
        %v498 = vld [vmem:[#allocation5 + $0x80] sm:$0xff]
        %v499 = vld [vmem:[#allocation5 + $0x88] sm:$0xff]
        %v500 = vld [vmem:[#allocation5 + $0x90] sm:$0xff]
        %v501 = vld [vmem:[#allocation5 + $0x98] sm:$0xff]
        %v502 = vld [vmem:[#allocation5 + $0xa0] sm:$0xff]
        %v503 = vld [vmem:[#allocation5 + $0xa8] sm:$0xff]
        %v504 = vld [vmem:[#allocation5 + $0xb0] sm:$0xff]
        %v505 = vld [vmem:[#allocation5 + $0xb8] sm:$0xff]
        %v506 = vld [vmem:[#allocation5 + $0xc0] sm:$0xff]
        %v507 = vld [vmem:[#allocation5 + $0xc8] sm:$0xff]
        %v508 = vld [vmem:[#allocation5 + $0xd0] sm:$0xff]
        %v509 = vld [vmem:[#allocation5 + $0xd8] sm:$0xff]
        %v510 = vld [vmem:[#allocation5 + $0xe0] sm:$0xff]
        %v511 = vld [vmem:[#allocation5 + $0xe8] sm:$0xff]
        %v512 = vld [vmem:[#allocation5 + $0xf0] sm:$0xff]
        %v513 = vld [vmem:[#allocation5 + $0xf8] sm:$0xff]
        %v514 = vld [vmem:[#allocation5 + $0x100] sm:$0xff]
        %v515 = vld [vmem:[#allocation5 + $0x108] sm:$0xff]
        %v516 = vld [vmem:[#allocation5 + $0x110] sm:$0xff]
        %v517 = vld [vmem:[#allocation5 + $0x118] sm:$0xff]
        %v518 = vld [vmem:[#allocation5 + $0x120] sm:$0xff]
        %v519 = vld [vmem:[#allocation5 + $0x128] sm:$0xff]
        %v520 = vld [vmem:[#allocation5 + $0x130] sm:$0xff]
        %v521 = vld [vmem:[#allocation5 + $0x138] sm:$0xff]
        %v522 = vld [vmem:[#allocation5 + $0x140] sm:$0xff]
        %v523 = vld [vmem:[#allocation5 + $0x148] sm:$0xff]
        %v524 = vld [vmem:[#allocation5 + $0x150] sm:$0xff]
        %v525 = vld [vmem:[#allocation5 + $0x158] sm:$0xff]
        %v526 = vld [vmem:[#allocation5 + $0x160] sm:$0xff]
        %v527 = vld [vmem:[#allocation5 + $0x168] sm:$0xff]
        %v528 = vld [vmem:[#allocation5 + $0x170] sm:$0xff]
        %v529 = vld [vmem:[#allocation5 + $0x178] sm:$0xff]
        %v530 = vld [vmem:[#allocation5 + $0x180] sm:$0xff]
        %v531 = vld [vmem:[#allocation5 + $0x188] sm:$0xff]
        %v532 = vld [vmem:[#allocation5 + $0x190] sm:$0xff]
        %v533 = vld [vmem:[#allocation5 + $0x198] sm:$0xff]
        %v534 = vld [vmem:[#allocation5 + $0x1a0] sm:$0xff]
        %v535 = vld [vmem:[#allocation5 + $0x1a8] sm:$0xff]
        %v536 = vld [vmem:[#allocation5 + $0x1b0] sm:$0xff]
        %v537 = vld [vmem:[#allocation5 + $0x1b8] sm:$0xff]
        %v538 = vld [vmem:[#allocation5 + $0x1c0] sm:$0xff]
        %v539 = vld [vmem:[#allocation5 + $0x1c8] sm:$0xff]
        %v540 = vld [vmem:[#allocation5 + $0x1d0] sm:$0xff]
        %v541 = vld [vmem:[#allocation5 + $0x1d8] sm:$0xff]
        %v542 = vld [vmem:[#allocation5 + $0x1e0] sm:$0xff]
        %v543 = vld [vmem:[#allocation5 + $0x1e8] sm:$0xff]
        %v544 = vld [vmem:[#allocation5 + $0x1f0] sm:$0xff]
        %v545 = vld [vmem:[#allocation5 + $0x1f8] sm:$0xff]
        %v546 = vld [vmem:[#allocation5 + $0x200] sm:$0xff]
        %v547 = vld [vmem:[#allocation5 + $0x208] sm:$0xff]
        %v548 = vld [vmem:[#allocation5 + $0x210] sm:$0xff]
        %v549 = vld [vmem:[#allocation5 + $0x218] sm:$0xff]
        %v550 = vld [vmem:[#allocation5 + $0x220] sm:$0xff]
        %v551 = vld [vmem:[#allocation5 + $0x228] sm:$0xff]
        %v552 = vld [vmem:[#allocation5 + $0x230] sm:$0xff]
        %v553 = vld [vmem:[#allocation5 + $0x238] sm:$0xff]
        %v554 = vld [vmem:[#allocation5 + $0x240] sm:$0xff]
        %v555 = vld [vmem:[#allocation5 + $0x248] sm:$0xff]
        %v556 = vld [vmem:[#allocation5 + $0x250] sm:$0xff]
        %v557 = vld [vmem:[#allocation5 + $0x258] sm:$0xff]
        %v558 = vld [vmem:[#allocation5 + $0x260] sm:$0xff]
        %v559 = vld [vmem:[#allocation5 + $0x268] sm:$0xff]
        %v560 = vld [vmem:[#allocation5 + $0x270] sm:$0xff]
        %v561 = vld [vmem:[#allocation5 + $0x278] sm:$0xff]
        %v562 = vld [vmem:[#allocation7] sm:$0x1]
        %v564 = vperm.slane %v562, 0
        %566 = vmatpush.msra.mxu0 %v497
        %567 = vmatpush.msra.mxu0 %v496
        %568 = vmatpush.msra.mxu0 %v495
        %569 = vmatpush.msra.mxu0 %v494
        %570 = vmatpush.msra.mxu0 %v493
        %571 = vmatpush.msra.mxu0 %v492
        %572 = vmatpush.msra.mxu0 %v491
        %573 = vmatpush.msra.mxu0 %v490
        %574 = vmatpush.msra.mxu0 %v489
        %575 = vmatpush.msra.mxu0 %v488
        %576 = vmatpush.msra.mxu0 %v487
        %577 = vmatpush.msra.mxu0 %v486
        %578 = vmatpush.msra.mxu0 %v485
        %579 = vmatpush.msra.mxu0 %v484
        %580 = vmatpush.msra.mxu0 %v483
        %581 = vmatpush.msra.mxu0 %v482
        %582 = vmatmul.f32.gmra.mxu0 %v242
        %v583 = vpop.f32.mrf.mxu0
        %v584 = vadd.f32 %v564, %v583
        %585 = vmatmul.f32.gmra.mxu0 %v247
        %v586 = vpop.f32.mrf.mxu0
        %v587 = vadd.f32 %v564, %v586
        %588 = vmatmul.f32.gmra.mxu0 %v252
        %v589 = vpop.f32.mrf.mxu0
        %v590 = vadd.f32 %v564, %v589
        %591 = vmatmul.f32.gmra.mxu0 %v257
        %v592 = vpop.f32.mrf.mxu0
        %v593 = vadd.f32 %v564, %v592
        %594 = vmatmul.f32.gmra.mxu0 %v262
        %v595 = vpop.f32.mrf.mxu0
        %v596 = vadd.f32 %v564, %v595
        %597 = vmatmul.f32.gmra.mxu0 %v267
        %v598 = vpop.f32.mrf.mxu0
        %v599 = vadd.f32 %v564, %v598
        %600 = vmatmul.f32.gmra.mxu0 %v272
        %v601 = vpop.f32.mrf.mxu0
        %v602 = vadd.f32 %v564, %v601
        %603 = vmatmul.f32.gmra.mxu0 %v277
        %v604 = vpop.f32.mrf.mxu0
        %v605 = vadd.f32 %v564, %v604
        %606 = vmatmul.f32.gmra.mxu0 %v282
        %v607 = vpop.f32.mrf.mxu0
        %v608 = vadd.f32 %v564, %v607
        %609 = vmatmul.f32.gmra.mxu0 %v287
        %v610 = vpop.f32.mrf.mxu0
        %v611 = vadd.f32 %v564, %v610
        %612 = vmatmul.f32.gmra.mxu0 %v292
        %v613 = vpop.f32.mrf.mxu0
        %v614 = vadd.f32 %v564, %v613
        %615 = vmatmul.f32.gmra.mxu0 %v297
        %v616 = vpop.f32.mrf.mxu0
        %v617 = vadd.f32 %v564, %v616
        %618 = vmatmul.f32.gmra.mxu0 %v302
        %v619 = vpop.f32.mrf.mxu0
        %v620 = vadd.f32 %v564, %v619
        %621 = vmatmul.f32.gmra.mxu0 %v307
        %v622 = vpop.f32.mrf.mxu0
        %v623 = vadd.f32 %v564, %v622
        %624 = vmatmul.f32.gmra.mxu0 %v312
        %v625 = vpop.f32.mrf.mxu0
        %v626 = vadd.f32 %v564, %v625
        %627 = vmatmul.f32.gmra.mxu0 %v317
        %v628 = vpop.f32.mrf.mxu0
        %v629 = vadd.f32 %v564, %v628
        %630 = vmatmul.f32.gmra.mxu0 %v322
        %v631 = vpop.f32.mrf.mxu0
        %v632 = vadd.f32 %v564, %v631
        %633 = vmatmul.f32.gmra.mxu0 %v327
        %v634 = vpop.f32.mrf.mxu0
        %v635 = vadd.f32 %v564, %v634
        %636 = vmatmul.f32.gmra.mxu0 %v332
        %v637 = vpop.f32.mrf.mxu0
        %v638 = vadd.f32 %v564, %v637
        %639 = vmatmul.f32.gmra.mxu0 %v337
        %v640 = vpop.f32.mrf.mxu0
        %v641 = vadd.f32 %v564, %v640
        %642 = vmatmul.f32.gmra.mxu0 %v342
        %v643 = vpop.f32.mrf.mxu0
        %v644 = vadd.f32 %v564, %v643
        %645 = vmatmul.f32.gmra.mxu0 %v347
        %v646 = vpop.f32.mrf.mxu0
        %v647 = vadd.f32 %v564, %v646
        %648 = vmatmul.f32.gmra.mxu0 %v352
        %v649 = vpop.f32.mrf.mxu0
        %v650 = vadd.f32 %v564, %v649
        %651 = vmatmul.f32.gmra.mxu0 %v357
        %v652 = vpop.f32.mrf.mxu0
        %v653 = vadd.f32 %v564, %v652
        %654 = vmatmul.f32.gmra.mxu0 %v362
        %v655 = vpop.f32.mrf.mxu0
        %v656 = vadd.f32 %v564, %v655
        %657 = vmatmul.f32.gmra.mxu0 %v367
        %v658 = vpop.f32.mrf.mxu0
        %v659 = vadd.f32 %v564, %v658
        %660 = vmatmul.f32.gmra.mxu0 %v372
        %v661 = vpop.f32.mrf.mxu0
        %v662 = vadd.f32 %v564, %v661
        %663 = vmatmul.f32.gmra.mxu0 %v377
        %v664 = vpop.f32.mrf.mxu0
        %v665 = vadd.f32 %v564, %v664
        %666 = vmatmul.f32.gmra.mxu0 %v382
        %v667 = vpop.f32.mrf.mxu0
        %v668 = vadd.f32 %v564, %v667
        %669 = vmatmul.f32.gmra.mxu0 %v387
        %v670 = vpop.f32.mrf.mxu0
        %v671 = vadd.f32 %v564, %v670
        %672 = vmatmul.f32.gmra.mxu0 %v392
        %v673 = vpop.f32.mrf.mxu0
        %v674 = vadd.f32 %v564, %v673
        %675 = vmatmul.f32.gmra.mxu0 %v397
        %v676 = vpop.f32.mrf.mxu0
        %v677 = vadd.f32 %v564, %v676
        %678 = vmatmul.f32.gmra.mxu0 %v402
        %v679 = vpop.f32.mrf.mxu0
        %v680 = vadd.f32 %v564, %v679
        %681 = vmatmul.f32.gmra.mxu0 %v407
        %v682 = vpop.f32.mrf.mxu0
        %v683 = vadd.f32 %v564, %v682
        %684 = vmatmul.f32.gmra.mxu0 %v412
        %v685 = vpop.f32.mrf.mxu0
        %v686 = vadd.f32 %v564, %v685
        %687 = vmatmul.f32.gmra.mxu0 %v417
        %v688 = vpop.f32.mrf.mxu0
        %v689 = vadd.f32 %v564, %v688
        %690 = vmatmul.f32.gmra.mxu0 %v422
        %v691 = vpop.f32.mrf.mxu0
        %v692 = vadd.f32 %v564, %v691
        %693 = vmatmul.f32.gmra.mxu0 %v427
        %v694 = vpop.f32.mrf.mxu0
        %v695 = vadd.f32 %v564, %v694
        %696 = vmatmul.f32.gmra.mxu0 %v432
        %v697 = vpop.f32.mrf.mxu0
        %v698 = vadd.f32 %v564, %v697
        %699 = vmatmul.f32.gmra.mxu0 %v437
        %v700 = vpop.f32.mrf.mxu0
        %v701 = vadd.f32 %v564, %v700
        %702 = vmatmul.f32.gmra.mxu0 %v442
        %v703 = vpop.f32.mrf.mxu0
        %v704 = vadd.f32 %v564, %v703
        %705 = vmatmul.f32.gmra.mxu0 %v447
        %v706 = vpop.f32.mrf.mxu0
        %v707 = vadd.f32 %v564, %v706
        %708 = vmatmul.f32.gmra.mxu0 %v452
        %v709 = vpop.f32.mrf.mxu0
        %v710 = vadd.f32 %v564, %v709
        %711 = vmatmul.f32.gmra.mxu0 %v457
        %v712 = vpop.f32.mrf.mxu0
        %v713 = vadd.f32 %v564, %v712
        %714 = vmatmul.f32.gmra.mxu0 %v462
        %v715 = vpop.f32.mrf.mxu0
        %v716 = vadd.f32 %v564, %v715
        %717 = vmatmul.f32.gmra.mxu0 %v467
        %v718 = vpop.f32.mrf.mxu0
        %v719 = vadd.f32 %v564, %v718
        %720 = vmatmul.f32.gmra.mxu0 %v472
        %v721 = vpop.f32.mrf.mxu0
        %v722 = vadd.f32 %v564, %v721
        %723 = vmatmul.f32.gmra.mxu0 %v477
        %v724 = vpop.f32.mrf.mxu0
        %v725 = vadd.f32 %v564, %v724
        %726 = vdwg.mxu0
        %727 = vmatpush.msra.mxu0 %v513
        %728 = vmatpush.msra.mxu0 %v512
        %729 = vmatpush.msra.mxu0 %v511
        %730 = vmatpush.msra.mxu0 %v510
        %731 = vmatpush.msra.mxu0 %v509
        %732 = vmatpush.msra.mxu0 %v508
        %733 = vmatpush.msra.mxu0 %v507
        %734 = vmatpush.msra.mxu0 %v506
        %735 = vmatpush.msra.mxu0 %v505
        %736 = vmatpush.msra.mxu0 %v504
        %737 = vmatpush.msra.mxu0 %v503
        %738 = vmatpush.msra.mxu0 %v502
        %739 = vmatpush.msra.mxu0 %v501
        %740 = vmatpush.msra.mxu0 %v500
        %741 = vmatpush.msra.mxu0 %v499
        %742 = vmatpush.msra.mxu0 %v498
        %743 = vmatmul.f32.gmra.mxu0 %v243
        %v744 = vpop.f32.mrf.mxu0
        %v745 = vadd.f32 %v584, %v744
        %746 = vmatmul.f32.gmra.mxu0 %v248
        %v747 = vpop.f32.mrf.mxu0
        %v748 = vadd.f32 %v587, %v747
        %749 = vmatmul.f32.gmra.mxu0 %v253
        %v750 = vpop.f32.mrf.mxu0
        %v751 = vadd.f32 %v590, %v750
        %752 = vmatmul.f32.gmra.mxu0 %v258
        %v753 = vpop.f32.mrf.mxu0
        %v754 = vadd.f32 %v593, %v753
        %755 = vmatmul.f32.gmra.mxu0 %v263
        %v756 = vpop.f32.mrf.mxu0
        %v757 = vadd.f32 %v596, %v756
        %758 = vmatmul.f32.gmra.mxu0 %v268
        %v759 = vpop.f32.mrf.mxu0
        %v760 = vadd.f32 %v599, %v759
        %761 = vmatmul.f32.gmra.mxu0 %v273
        %v762 = vpop.f32.mrf.mxu0
        %v763 = vadd.f32 %v602, %v762
        %764 = vmatmul.f32.gmra.mxu0 %v278
        %v765 = vpop.f32.mrf.mxu0
        %v766 = vadd.f32 %v605, %v765
        %767 = vmatmul.f32.gmra.mxu0 %v283
        %v768 = vpop.f32.mrf.mxu0
        %v769 = vadd.f32 %v608, %v768
        %770 = vmatmul.f32.gmra.mxu0 %v288
        %v771 = vpop.f32.mrf.mxu0
        %v772 = vadd.f32 %v611, %v771
        %773 = vmatmul.f32.gmra.mxu0 %v293
        %v774 = vpop.f32.mrf.mxu0
        %v775 = vadd.f32 %v614, %v774
        %776 = vmatmul.f32.gmra.mxu0 %v298
        %v777 = vpop.f32.mrf.mxu0
        %v778 = vadd.f32 %v617, %v777
        %779 = vmatmul.f32.gmra.mxu0 %v303
        %v780 = vpop.f32.mrf.mxu0
        %v781 = vadd.f32 %v620, %v780
        %782 = vmatmul.f32.gmra.mxu0 %v308
        %v783 = vpop.f32.mrf.mxu0
        %v784 = vadd.f32 %v623, %v783
        %785 = vmatmul.f32.gmra.mxu0 %v313
        %v786 = vpop.f32.mrf.mxu0
        %v787 = vadd.f32 %v626, %v786
        %788 = vmatmul.f32.gmra.mxu0 %v318
        %v789 = vpop.f32.mrf.mxu0
        %v790 = vadd.f32 %v629, %v789
        %791 = vmatmul.f32.gmra.mxu0 %v323
        %v792 = vpop.f32.mrf.mxu0
        %v793 = vadd.f32 %v632, %v792
        %794 = vmatmul.f32.gmra.mxu0 %v328
        %v795 = vpop.f32.mrf.mxu0
        %v796 = vadd.f32 %v635, %v795
        %797 = vmatmul.f32.gmra.mxu0 %v333
        %v798 = vpop.f32.mrf.mxu0
        %v799 = vadd.f32 %v638, %v798
        %800 = vmatmul.f32.gmra.mxu0 %v338
        %v801 = vpop.f32.mrf.mxu0
        %v802 = vadd.f32 %v641, %v801
        %803 = vmatmul.f32.gmra.mxu0 %v343
        %v804 = vpop.f32.mrf.mxu0
        %v805 = vadd.f32 %v644, %v804
        %806 = vmatmul.f32.gmra.mxu0 %v348
        %v807 = vpop.f32.mrf.mxu0
        %v808 = vadd.f32 %v647, %v807
        %809 = vmatmul.f32.gmra.mxu0 %v353
        %v810 = vpop.f32.mrf.mxu0
        %v811 = vadd.f32 %v650, %v810
        %812 = vmatmul.f32.gmra.mxu0 %v358
        %v813 = vpop.f32.mrf.mxu0
        %v814 = vadd.f32 %v653, %v813
        %815 = vmatmul.f32.gmra.mxu0 %v363
        %v816 = vpop.f32.mrf.mxu0
        %v817 = vadd.f32 %v656, %v816
        %818 = vmatmul.f32.gmra.mxu0 %v368
        %v819 = vpop.f32.mrf.mxu0
        %v820 = vadd.f32 %v659, %v819
        %821 = vmatmul.f32.gmra.mxu0 %v373
        %v822 = vpop.f32.mrf.mxu0
        %v823 = vadd.f32 %v662, %v822
        %824 = vmatmul.f32.gmra.mxu0 %v378
        %v825 = vpop.f32.mrf.mxu0
        %v826 = vadd.f32 %v665, %v825
        %827 = vmatmul.f32.gmra.mxu0 %v383
        %v828 = vpop.f32.mrf.mxu0
        %v829 = vadd.f32 %v668, %v828
        %830 = vmatmul.f32.gmra.mxu0 %v388
        %v831 = vpop.f32.mrf.mxu0
        %v832 = vadd.f32 %v671, %v831
        %833 = vmatmul.f32.gmra.mxu0 %v393
        %v834 = vpop.f32.mrf.mxu0
        %v835 = vadd.f32 %v674, %v834
        %836 = vmatmul.f32.gmra.mxu0 %v398
        %v837 = vpop.f32.mrf.mxu0
        %v838 = vadd.f32 %v677, %v837
        %839 = vmatmul.f32.gmra.mxu0 %v403
        %v840 = vpop.f32.mrf.mxu0
        %v841 = vadd.f32 %v680, %v840
        %842 = vmatmul.f32.gmra.mxu0 %v408
        %v843 = vpop.f32.mrf.mxu0
        %v844 = vadd.f32 %v683, %v843
        %845 = vmatmul.f32.gmra.mxu0 %v413
        %v846 = vpop.f32.mrf.mxu0
        %v847 = vadd.f32 %v686, %v846
        %848 = vmatmul.f32.gmra.mxu0 %v418
        %v849 = vpop.f32.mrf.mxu0
        %v850 = vadd.f32 %v689, %v849
        %851 = vmatmul.f32.gmra.mxu0 %v423
        %v852 = vpop.f32.mrf.mxu0
        %v853 = vadd.f32 %v692, %v852
        %854 = vmatmul.f32.gmra.mxu0 %v428
        %v855 = vpop.f32.mrf.mxu0
        %v856 = vadd.f32 %v695, %v855
        %857 = vmatmul.f32.gmra.mxu0 %v433
        %v858 = vpop.f32.mrf.mxu0
        %v859 = vadd.f32 %v698, %v858
        %860 = vmatmul.f32.gmra.mxu0 %v438
        %v861 = vpop.f32.mrf.mxu0
        %v862 = vadd.f32 %v701, %v861
        %863 = vmatmul.f32.gmra.mxu0 %v443
        %v864 = vpop.f32.mrf.mxu0
        %v865 = vadd.f32 %v704, %v864
        %866 = vmatmul.f32.gmra.mxu0 %v448
        %v867 = vpop.f32.mrf.mxu0
        %v868 = vadd.f32 %v707, %v867
        %869 = vmatmul.f32.gmra.mxu0 %v453
        %v870 = vpop.f32.mrf.mxu0
        %v871 = vadd.f32 %v710, %v870
        %872 = vmatmul.f32.gmra.mxu0 %v458
        %v873 = vpop.f32.mrf.mxu0
        %v874 = vadd.f32 %v713, %v873
        %875 = vmatmul.f32.gmra.mxu0 %v463
        %v876 = vpop.f32.mrf.mxu0
        %v877 = vadd.f32 %v716, %v876
        %878 = vmatmul.f32.gmra.mxu0 %v468
        %v879 = vpop.f32.mrf.mxu0
        %v880 = vadd.f32 %v719, %v879
        %881 = vmatmul.f32.gmra.mxu0 %v473
        %v882 = vpop.f32.mrf.mxu0
        %v883 = vadd.f32 %v722, %v882
        %884 = vmatmul.f32.gmra.mxu0 %v478
        %v885 = vpop.f32.mrf.mxu0
        %v886 = vadd.f32 %v725, %v885
        %887 = vdwg.mxu0
        %888 = vmatpush.msra.mxu0 %v529
        %889 = vmatpush.msra.mxu0 %v528
        %890 = vmatpush.msra.mxu0 %v527
        %891 = vmatpush.msra.mxu0 %v526
        %892 = vmatpush.msra.mxu0 %v525
        %893 = vmatpush.msra.mxu0 %v524
        %894 = vmatpush.msra.mxu0 %v523
        %895 = vmatpush.msra.mxu0 %v522
        %896 = vmatpush.msra.mxu0 %v521
        %897 = vmatpush.msra.mxu0 %v520
        %898 = vmatpush.msra.mxu0 %v519
        %899 = vmatpush.msra.mxu0 %v518
        %900 = vmatpush.msra.mxu0 %v517
        %901 = vmatpush.msra.mxu0 %v516
        %902 = vmatpush.msra.mxu0 %v515
        %903 = vmatpush.msra.mxu0 %v514
        %904 = vmatmul.f32.gmra.mxu0 %v244
        %v905 = vpop.f32.mrf.mxu0
        %v906 = vadd.f32 %v745, %v905
        %907 = vmatmul.f32.gmra.mxu0 %v249
        %v908 = vpop.f32.mrf.mxu0
        %v909 = vadd.f32 %v748, %v908
        %910 = vmatmul.f32.gmra.mxu0 %v254
        %v911 = vpop.f32.mrf.mxu0
        %v912 = vadd.f32 %v751, %v911
        %913 = vmatmul.f32.gmra.mxu0 %v259
        %v914 = vpop.f32.mrf.mxu0
        %v915 = vadd.f32 %v754, %v914
        %916 = vmatmul.f32.gmra.mxu0 %v264
        %v917 = vpop.f32.mrf.mxu0
        %v918 = vadd.f32 %v757, %v917
        %919 = vmatmul.f32.gmra.mxu0 %v269
        %v920 = vpop.f32.mrf.mxu0
        %v921 = vadd.f32 %v760, %v920
        %922 = vmatmul.f32.gmra.mxu0 %v274
        %v923 = vpop.f32.mrf.mxu0
        %v924 = vadd.f32 %v763, %v923
        %925 = vmatmul.f32.gmra.mxu0 %v279
        %v926 = vpop.f32.mrf.mxu0
        %v927 = vadd.f32 %v766, %v926
        %928 = vmatmul.f32.gmra.mxu0 %v284
        %v929 = vpop.f32.mrf.mxu0
        %v930 = vadd.f32 %v769, %v929
        %931 = vmatmul.f32.gmra.mxu0 %v289
        %v932 = vpop.f32.mrf.mxu0
        %v933 = vadd.f32 %v772, %v932
        %934 = vmatmul.f32.gmra.mxu0 %v294
        %v935 = vpop.f32.mrf.mxu0
        %v936 = vadd.f32 %v775, %v935
        %937 = vmatmul.f32.gmra.mxu0 %v299
        %v938 = vpop.f32.mrf.mxu0
        %v939 = vadd.f32 %v778, %v938
        %940 = vmatmul.f32.gmra.mxu0 %v304
        %v941 = vpop.f32.mrf.mxu0
        %v942 = vadd.f32 %v781, %v941
        %943 = vmatmul.f32.gmra.mxu0 %v309
        %v944 = vpop.f32.mrf.mxu0
        %v945 = vadd.f32 %v784, %v944
        %946 = vmatmul.f32.gmra.mxu0 %v314
        %v947 = vpop.f32.mrf.mxu0
        %v948 = vadd.f32 %v787, %v947
        %949 = vmatmul.f32.gmra.mxu0 %v319
        %v950 = vpop.f32.mrf.mxu0
        %v951 = vadd.f32 %v790, %v950
        %952 = vmatmul.f32.gmra.mxu0 %v324
        %v953 = vpop.f32.mrf.mxu0
        %v954 = vadd.f32 %v793, %v953
        %955 = vmatmul.f32.gmra.mxu0 %v329
        %v956 = vpop.f32.mrf.mxu0
        %v957 = vadd.f32 %v796, %v956
        %958 = vmatmul.f32.gmra.mxu0 %v334
        %v959 = vpop.f32.mrf.mxu0
        %v960 = vadd.f32 %v799, %v959
        %961 = vmatmul.f32.gmra.mxu0 %v339
        %v962 = vpop.f32.mrf.mxu0
        %v963 = vadd.f32 %v802, %v962
        %964 = vmatmul.f32.gmra.mxu0 %v344
        %v965 = vpop.f32.mrf.mxu0
        %v966 = vadd.f32 %v805, %v965
        %967 = vmatmul.f32.gmra.mxu0 %v349
        %v968 = vpop.f32.mrf.mxu0
        %v969 = vadd.f32 %v808, %v968
        %970 = vmatmul.f32.gmra.mxu0 %v354
        %v971 = vpop.f32.mrf.mxu0
        %v972 = vadd.f32 %v811, %v971
        %973 = vmatmul.f32.gmra.mxu0 %v359
        %v974 = vpop.f32.mrf.mxu0
        %v975 = vadd.f32 %v814, %v974
        %976 = vmatmul.f32.gmra.mxu0 %v364
        %v977 = vpop.f32.mrf.mxu0
        %v978 = vadd.f32 %v817, %v977
        %979 = vmatmul.f32.gmra.mxu0 %v369
        %v980 = vpop.f32.mrf.mxu0
        %v981 = vadd.f32 %v820, %v980
        %982 = vmatmul.f32.gmra.mxu0 %v374
        %v983 = vpop.f32.mrf.mxu0
        %v984 = vadd.f32 %v823, %v983
        %985 = vmatmul.f32.gmra.mxu0 %v379
        %v986 = vpop.f32.mrf.mxu0
        %v987 = vadd.f32 %v826, %v986
        %988 = vmatmul.f32.gmra.mxu0 %v384
        %v989 = vpop.f32.mrf.mxu0
        %v990 = vadd.f32 %v829, %v989
        %991 = vmatmul.f32.gmra.mxu0 %v389
        %v992 = vpop.f32.mrf.mxu0
        %v993 = vadd.f32 %v832, %v992
        %994 = vmatmul.f32.gmra.mxu0 %v394
        %v995 = vpop.f32.mrf.mxu0
        %v996 = vadd.f32 %v835, %v995
        %997 = vmatmul.f32.gmra.mxu0 %v399
        %v998 = vpop.f32.mrf.mxu0
        %v999 = vadd.f32 %v838, %v998
        %1000 = vmatmul.f32.gmra.mxu0 %v404
        %v1001 = vpop.f32.mrf.mxu0
        %v1002 = vadd.f32 %v841, %v1001
        %1003 = vmatmul.f32.gmra.mxu0 %v409
        %v1004 = vpop.f32.mrf.mxu0
        %v1005 = vadd.f32 %v844, %v1004
        %1006 = vmatmul.f32.gmra.mxu0 %v414
        %v1007 = vpop.f32.mrf.mxu0
        %v1008 = vadd.f32 %v847, %v1007
        %1009 = vmatmul.f32.gmra.mxu0 %v419
        %v1010 = vpop.f32.mrf.mxu0
        %v1011 = vadd.f32 %v850, %v1010
        %1012 = vmatmul.f32.gmra.mxu0 %v424
        %v1013 = vpop.f32.mrf.mxu0
        %v1014 = vadd.f32 %v853, %v1013
        %1015 = vmatmul.f32.gmra.mxu0 %v429
        %v1016 = vpop.f32.mrf.mxu0
        %v1017 = vadd.f32 %v856, %v1016
        %1018 = vmatmul.f32.gmra.mxu0 %v434
        %v1019 = vpop.f32.mrf.mxu0
        %v1020 = vadd.f32 %v859, %v1019
        %1021 = vmatmul.f32.gmra.mxu0 %v439
        %v1022 = vpop.f32.mrf.mxu0
        %v1023 = vadd.f32 %v862, %v1022
        %1024 = vmatmul.f32.gmra.mxu0 %v444
        %v1025 = vpop.f32.mrf.mxu0
        %v1026 = vadd.f32 %v865, %v1025
        %1027 = vmatmul.f32.gmra.mxu0 %v449
        %v1028 = vpop.f32.mrf.mxu0
        %v1029 = vadd.f32 %v868, %v1028
        %1030 = vmatmul.f32.gmra.mxu0 %v454
        %v1031 = vpop.f32.mrf.mxu0
        %v1032 = vadd.f32 %v871, %v1031
        %1033 = vmatmul.f32.gmra.mxu0 %v459
        %v1034 = vpop.f32.mrf.mxu0
        %v1035 = vadd.f32 %v874, %v1034
        %1036 = vmatmul.f32.gmra.mxu0 %v464
        %v1037 = vpop.f32.mrf.mxu0
        %v1038 = vadd.f32 %v877, %v1037
        %1039 = vmatmul.f32.gmra.mxu0 %v469
        %v1040 = vpop.f32.mrf.mxu0
        %v1041 = vadd.f32 %v880, %v1040
        %1042 = vmatmul.f32.gmra.mxu0 %v474
        %v1043 = vpop.f32.mrf.mxu0
        %v1044 = vadd.f32 %v883, %v1043
        %1045 = vmatmul.f32.gmra.mxu0 %v479
        %v1046 = vpop.f32.mrf.mxu0
        %v1047 = vadd.f32 %v886, %v1046
        %1048 = vdwg.mxu0
        %1049 = vmatpush.msra.mxu0 %v545
        %1050 = vmatpush.msra.mxu0 %v544
        %1051 = vmatpush.msra.mxu0 %v543
        %1052 = vmatpush.msra.mxu0 %v542
        %1053 = vmatpush.msra.mxu0 %v541
        %1054 = vmatpush.msra.mxu0 %v540
        %1055 = vmatpush.msra.mxu0 %v539
        %1056 = vmatpush.msra.mxu0 %v538
        %1057 = vmatpush.msra.mxu0 %v537
        %1058 = vmatpush.msra.mxu0 %v536
        %1059 = vmatpush.msra.mxu0 %v535
        %1060 = vmatpush.msra.mxu0 %v534
        %1061 = vmatpush.msra.mxu0 %v533
        %1062 = vmatpush.msra.mxu0 %v532
        %1063 = vmatpush.msra.mxu0 %v531
        %1064 = vmatpush.msra.mxu0 %v530
        %1065 = vmatmul.f32.gmra.mxu0 %v245
        %v1066 = vpop.f32.mrf.mxu0
        %v1067 = vadd.f32 %v906, %v1066
        %1068 = vmatmul.f32.gmra.mxu0 %v250
        %v1069 = vpop.f32.mrf.mxu0
        %v1070 = vadd.f32 %v909, %v1069
        %1071 = vmatmul.f32.gmra.mxu0 %v255
        %v1072 = vpop.f32.mrf.mxu0
        %v1073 = vadd.f32 %v912, %v1072
        %1074 = vmatmul.f32.gmra.mxu0 %v260
        %v1075 = vpop.f32.mrf.mxu0
        %v1076 = vadd.f32 %v915, %v1075
        %1077 = vmatmul.f32.gmra.mxu0 %v265
        %v1078 = vpop.f32.mrf.mxu0
        %v1079 = vadd.f32 %v918, %v1078
        %1080 = vmatmul.f32.gmra.mxu0 %v270
        %v1081 = vpop.f32.mrf.mxu0
        %v1082 = vadd.f32 %v921, %v1081
        %1083 = vmatmul.f32.gmra.mxu0 %v275
        %v1084 = vpop.f32.mrf.mxu0
        %v1085 = vadd.f32 %v924, %v1084
        %1086 = vmatmul.f32.gmra.mxu0 %v280
        %v1087 = vpop.f32.mrf.mxu0
        %v1088 = vadd.f32 %v927, %v1087
        %1089 = vmatmul.f32.gmra.mxu0 %v285
        %v1090 = vpop.f32.mrf.mxu0
        %v1091 = vadd.f32 %v930, %v1090
        %1092 = vmatmul.f32.gmra.mxu0 %v290
        %v1093 = vpop.f32.mrf.mxu0
        %v1094 = vadd.f32 %v933, %v1093
        %1095 = vmatmul.f32.gmra.mxu0 %v295
        %v1096 = vpop.f32.mrf.mxu0
        %v1097 = vadd.f32 %v936, %v1096
        %1098 = vmatmul.f32.gmra.mxu0 %v300
        %v1099 = vpop.f32.mrf.mxu0
        %v1100 = vadd.f32 %v939, %v1099
        %1101 = vmatmul.f32.gmra.mxu0 %v305
        %v1102 = vpop.f32.mrf.mxu0
        %v1103 = vadd.f32 %v942, %v1102
        %1104 = vmatmul.f32.gmra.mxu0 %v310
        %v1105 = vpop.f32.mrf.mxu0
        %v1106 = vadd.f32 %v945, %v1105
        %1107 = vmatmul.f32.gmra.mxu0 %v315
        %v1108 = vpop.f32.mrf.mxu0
        %v1109 = vadd.f32 %v948, %v1108
        %1110 = vmatmul.f32.gmra.mxu0 %v320
        %v1111 = vpop.f32.mrf.mxu0
        %v1112 = vadd.f32 %v951, %v1111
        %1113 = vmatmul.f32.gmra.mxu0 %v325
        %v1114 = vpop.f32.mrf.mxu0
        %v1115 = vadd.f32 %v954, %v1114
        %1116 = vmatmul.f32.gmra.mxu0 %v330
        %v1117 = vpop.f32.mrf.mxu0
        %v1118 = vadd.f32 %v957, %v1117
        %1119 = vmatmul.f32.gmra.mxu0 %v335
        %v1120 = vpop.f32.mrf.mxu0
        %v1121 = vadd.f32 %v960, %v1120
        %1122 = vmatmul.f32.gmra.mxu0 %v340
        %v1123 = vpop.f32.mrf.mxu0
        %v1124 = vadd.f32 %v963, %v1123
        %1125 = vmatmul.f32.gmra.mxu0 %v345
        %v1126 = vpop.f32.mrf.mxu0
        %v1127 = vadd.f32 %v966, %v1126
        %1128 = vmatmul.f32.gmra.mxu0 %v350
        %v1129 = vpop.f32.mrf.mxu0
        %v1130 = vadd.f32 %v969, %v1129
        %1131 = vmatmul.f32.gmra.mxu0 %v355
        %v1132 = vpop.f32.mrf.mxu0
        %v1133 = vadd.f32 %v972, %v1132
        %1134 = vmatmul.f32.gmra.mxu0 %v360
        %v1135 = vpop.f32.mrf.mxu0
        %v1136 = vadd.f32 %v975, %v1135
        %1137 = vmatmul.f32.gmra.mxu0 %v365
        %v1138 = vpop.f32.mrf.mxu0
        %v1139 = vadd.f32 %v978, %v1138
        %1140 = vmatmul.f32.gmra.mxu0 %v370
        %v1141 = vpop.f32.mrf.mxu0
        %v1142 = vadd.f32 %v981, %v1141
        %1143 = vmatmul.f32.gmra.mxu0 %v375
        %v1144 = vpop.f32.mrf.mxu0
        %v1145 = vadd.f32 %v984, %v1144
        %1146 = vmatmul.f32.gmra.mxu0 %v380
        %v1147 = vpop.f32.mrf.mxu0
        %v1148 = vadd.f32 %v987, %v1147
        %1149 = vmatmul.f32.gmra.mxu0 %v385
        %v1150 = vpop.f32.mrf.mxu0
        %v1151 = vadd.f32 %v990, %v1150
        %1152 = vmatmul.f32.gmra.mxu0 %v390
        %v1153 = vpop.f32.mrf.mxu0
        %v1154 = vadd.f32 %v993, %v1153
        %1155 = vmatmul.f32.gmra.mxu0 %v395
        %v1156 = vpop.f32.mrf.mxu0
        %v1157 = vadd.f32 %v996, %v1156
        %1158 = vmatmul.f32.gmra.mxu0 %v400
        %v1159 = vpop.f32.mrf.mxu0
        %v1160 = vadd.f32 %v999, %v1159
        %1161 = vmatmul.f32.gmra.mxu0 %v405
        %v1162 = vpop.f32.mrf.mxu0
        %v1163 = vadd.f32 %v1002, %v1162
        %1164 = vmatmul.f32.gmra.mxu0 %v410
        %v1165 = vpop.f32.mrf.mxu0
        %v1166 = vadd.f32 %v1005, %v1165
        %1167 = vmatmul.f32.gmra.mxu0 %v415
        %v1168 = vpop.f32.mrf.mxu0
        %v1169 = vadd.f32 %v1008, %v1168
        %1170 = vmatmul.f32.gmra.mxu0 %v420
        %v1171 = vpop.f32.mrf.mxu0
        %v1172 = vadd.f32 %v1011, %v1171
        %1173 = vmatmul.f32.gmra.mxu0 %v425
        %v1174 = vpop.f32.mrf.mxu0
        %v1175 = vadd.f32 %v1014, %v1174
        %1176 = vmatmul.f32.gmra.mxu0 %v430
        %v1177 = vpop.f32.mrf.mxu0
        %v1178 = vadd.f32 %v1017, %v1177
        %1179 = vmatmul.f32.gmra.mxu0 %v435
        %v1180 = vpop.f32.mrf.mxu0
        %v1181 = vadd.f32 %v1020, %v1180
        %1182 = vmatmul.f32.gmra.mxu0 %v440
        %v1183 = vpop.f32.mrf.mxu0
        %v1184 = vadd.f32 %v1023, %v1183
        %1185 = vmatmul.f32.gmra.mxu0 %v445
        %v1186 = vpop.f32.mrf.mxu0
        %v1187 = vadd.f32 %v1026, %v1186
        %1188 = vmatmul.f32.gmra.mxu0 %v450
        %v1189 = vpop.f32.mrf.mxu0
        %v1190 = vadd.f32 %v1029, %v1189
        %1191 = vmatmul.f32.gmra.mxu0 %v455
        %v1192 = vpop.f32.mrf.mxu0
        %v1193 = vadd.f32 %v1032, %v1192
        %1194 = vmatmul.f32.gmra.mxu0 %v460
        %v1195 = vpop.f32.mrf.mxu0
        %v1196 = vadd.f32 %v1035, %v1195
        %1197 = vmatmul.f32.gmra.mxu0 %v465
        %v1198 = vpop.f32.mrf.mxu0
        %v1199 = vadd.f32 %v1038, %v1198
        %1200 = vmatmul.f32.gmra.mxu0 %v470
        %v1201 = vpop.f32.mrf.mxu0
        %v1202 = vadd.f32 %v1041, %v1201
        %1203 = vmatmul.f32.gmra.mxu0 %v475
        %v1204 = vpop.f32.mrf.mxu0
        %v1205 = vadd.f32 %v1044, %v1204
        %1206 = vmatmul.f32.gmra.mxu0 %v480
        %v1207 = vpop.f32.mrf.mxu0
        %v1208 = vadd.f32 %v1047, %v1207
        %1209 = vdwg.mxu0
        %1210 = vmatpush.msra.mxu0 %v561
        %1211 = vmatpush.msra.mxu0 %v560
        %1212 = vmatpush.msra.mxu0 %v559
        %1213 = vmatpush.msra.mxu0 %v558
        %1214 = vmatpush.msra.mxu0 %v557
        %1215 = vmatpush.msra.mxu0 %v556
        %1216 = vmatpush.msra.mxu0 %v555
        %1217 = vmatpush.msra.mxu0 %v554
        %1218 = vmatpush.msra.mxu0 %v553
        %1219 = vmatpush.msra.mxu0 %v552
        %1220 = vmatpush.msra.mxu0 %v551
        %1221 = vmatpush.msra.mxu0 %v550
        %1222 = vmatpush.msra.mxu0 %v549
        %1223 = vmatpush.msra.mxu0 %v548
        %1224 = vmatpush.msra.mxu0 %v547
        %1225 = vmatpush.msra.mxu0 %v546
        %1226 = vmatmul.f32.gmra.mxu0 %v246
        %v1227 = vpop.f32.mrf.mxu0
        %v1228 = vadd.f32 %v1067, %v1227
        %1229 = vmatmul.f32.gmra.mxu0 %v251
        %v1230 = vpop.f32.mrf.mxu0
        %v1231 = vadd.f32 %v1070, %v1230
        %1232 = vmatmul.f32.gmra.mxu0 %v256
        %v1233 = vpop.f32.mrf.mxu0
        %v1234 = vadd.f32 %v1073, %v1233
        %1235 = vmatmul.f32.gmra.mxu0 %v261
        %v1236 = vpop.f32.mrf.mxu0
        %v1237 = vadd.f32 %v1076, %v1236
        %1238 = vmatmul.f32.gmra.mxu0 %v266
        %v1239 = vpop.f32.mrf.mxu0
        %v1240 = vadd.f32 %v1079, %v1239
        %1241 = vmatmul.f32.gmra.mxu0 %v271
        %v1242 = vpop.f32.mrf.mxu0
        %v1243 = vadd.f32 %v1082, %v1242
        %1244 = vmatmul.f32.gmra.mxu0 %v276
        %v1245 = vpop.f32.mrf.mxu0
        %v1246 = vadd.f32 %v1085, %v1245
        %1247 = vmatmul.f32.gmra.mxu0 %v281
        %v1248 = vpop.f32.mrf.mxu0
        %v1249 = vadd.f32 %v1088, %v1248
        %1250 = vmatmul.f32.gmra.mxu0 %v286
        %v1251 = vpop.f32.mrf.mxu0
        %v1252 = vadd.f32 %v1091, %v1251
        %1253 = vmatmul.f32.gmra.mxu0 %v291
        %v1254 = vpop.f32.mrf.mxu0
        %v1255 = vadd.f32 %v1094, %v1254
        %1256 = vmatmul.f32.gmra.mxu0 %v296
        %v1257 = vpop.f32.mrf.mxu0
        %v1258 = vadd.f32 %v1097, %v1257
        %1259 = vmatmul.f32.gmra.mxu0 %v301
        %v1260 = vpop.f32.mrf.mxu0
        %v1261 = vadd.f32 %v1100, %v1260
        %1262 = vmatmul.f32.gmra.mxu0 %v306
        %v1263 = vpop.f32.mrf.mxu0
        %v1264 = vadd.f32 %v1103, %v1263
        %1265 = vmatmul.f32.gmra.mxu0 %v311
        %v1266 = vpop.f32.mrf.mxu0
        %v1267 = vadd.f32 %v1106, %v1266
        %1268 = vmatmul.f32.gmra.mxu0 %v316
        %v1269 = vpop.f32.mrf.mxu0
        %v1270 = vadd.f32 %v1109, %v1269
        %1271 = vmatmul.f32.gmra.mxu0 %v321
        %v1272 = vpop.f32.mrf.mxu0
        %v1273 = vadd.f32 %v1112, %v1272
        %1274 = vmatmul.f32.gmra.mxu0 %v326
        %v1275 = vpop.f32.mrf.mxu0
        %v1276 = vadd.f32 %v1115, %v1275
        %1277 = vmatmul.f32.gmra.mxu0 %v331
        %v1278 = vpop.f32.mrf.mxu0
        %v1279 = vadd.f32 %v1118, %v1278
        %1280 = vmatmul.f32.gmra.mxu0 %v336
        %v1281 = vpop.f32.mrf.mxu0
        %v1282 = vadd.f32 %v1121, %v1281
        %1283 = vmatmul.f32.gmra.mxu0 %v341
        %v1284 = vpop.f32.mrf.mxu0
        %v1285 = vadd.f32 %v1124, %v1284
        %1286 = vmatmul.f32.gmra.mxu0 %v346
        %v1287 = vpop.f32.mrf.mxu0
        %v1288 = vadd.f32 %v1127, %v1287
        %1289 = vmatmul.f32.gmra.mxu0 %v351
        %v1290 = vpop.f32.mrf.mxu0
        %v1291 = vadd.f32 %v1130, %v1290
        %1292 = vmatmul.f32.gmra.mxu0 %v356
        %v1293 = vpop.f32.mrf.mxu0
        %v1294 = vadd.f32 %v1133, %v1293
        %1295 = vmatmul.f32.gmra.mxu0 %v361
        %v1296 = vpop.f32.mrf.mxu0
        %v1297 = vadd.f32 %v1136, %v1296
        %1298 = vmatmul.f32.gmra.mxu0 %v366
        %v1299 = vpop.f32.mrf.mxu0
        %v1300 = vadd.f32 %v1139, %v1299
        %1301 = vmatmul.f32.gmra.mxu0 %v371
        %v1302 = vpop.f32.mrf.mxu0
        %v1303 = vadd.f32 %v1142, %v1302
        %1304 = vmatmul.f32.gmra.mxu0 %v376
        %v1305 = vpop.f32.mrf.mxu0
        %v1306 = vadd.f32 %v1145, %v1305
        %1307 = vmatmul.f32.gmra.mxu0 %v381
        %v1308 = vpop.f32.mrf.mxu0
        %v1309 = vadd.f32 %v1148, %v1308
        %1310 = vmatmul.f32.gmra.mxu0 %v386
        %v1311 = vpop.f32.mrf.mxu0
        %v1312 = vadd.f32 %v1151, %v1311
        %1313 = vmatmul.f32.gmra.mxu0 %v391
        %v1314 = vpop.f32.mrf.mxu0
        %v1315 = vadd.f32 %v1154, %v1314
        %1316 = vmatmul.f32.gmra.mxu0 %v396
        %v1317 = vpop.f32.mrf.mxu0
        %v1318 = vadd.f32 %v1157, %v1317
        %1319 = vmatmul.f32.gmra.mxu0 %v401
        %v1320 = vpop.f32.mrf.mxu0
        %v1321 = vadd.f32 %v1160, %v1320
        %1322 = vmatmul.f32.gmra.mxu0 %v406
        %v1323 = vpop.f32.mrf.mxu0
        %v1324 = vadd.f32 %v1163, %v1323
        %1325 = vmatmul.f32.gmra.mxu0 %v411
        %v1326 = vpop.f32.mrf.mxu0
        %v1327 = vadd.f32 %v1166, %v1326
        %1328 = vmatmul.f32.gmra.mxu0 %v416
        %v1329 = vpop.f32.mrf.mxu0
        %v1330 = vadd.f32 %v1169, %v1329
        %1331 = vmatmul.f32.gmra.mxu0 %v421
        %v1332 = vpop.f32.mrf.mxu0
        %v1333 = vadd.f32 %v1172, %v1332
        %1334 = vmatmul.f32.gmra.mxu0 %v426
        %v1335 = vpop.f32.mrf.mxu0
        %v1336 = vadd.f32 %v1175, %v1335
        %1337 = vmatmul.f32.gmra.mxu0 %v431
        %v1338 = vpop.f32.mrf.mxu0
        %v1339 = vadd.f32 %v1178, %v1338
        %1340 = vmatmul.f32.gmra.mxu0 %v436
        %v1341 = vpop.f32.mrf.mxu0
        %v1342 = vadd.f32 %v1181, %v1341
        %1343 = vmatmul.f32.gmra.mxu0 %v441
        %v1344 = vpop.f32.mrf.mxu0
        %v1345 = vadd.f32 %v1184, %v1344
        %1346 = vmatmul.f32.gmra.mxu0 %v446
        %v1347 = vpop.f32.mrf.mxu0
        %v1348 = vadd.f32 %v1187, %v1347
        %1349 = vmatmul.f32.gmra.mxu0 %v451
        %v1350 = vpop.f32.mrf.mxu0
        %v1351 = vadd.f32 %v1190, %v1350
        %1352 = vmatmul.f32.gmra.mxu0 %v456
        %v1353 = vpop.f32.mrf.mxu0
        %v1354 = vadd.f32 %v1193, %v1353
        %1355 = vmatmul.f32.gmra.mxu0 %v461
        %v1356 = vpop.f32.mrf.mxu0
        %v1357 = vadd.f32 %v1196, %v1356
        %1358 = vmatmul.f32.gmra.mxu0 %v466
        %v1359 = vpop.f32.mrf.mxu0
        %v1360 = vadd.f32 %v1199, %v1359
        %1361 = vmatmul.f32.gmra.mxu0 %v471
        %v1362 = vpop.f32.mrf.mxu0
        %v1363 = vadd.f32 %v1202, %v1362
        %1364 = vmatmul.f32.gmra.mxu0 %v476
        %v1365 = vpop.f32.mrf.mxu0
        %v1366 = vadd.f32 %v1205, %v1365
        %1367 = vmatmul.f32.gmra.mxu0 %v481
        %v1368 = vpop.f32.mrf.mxu0
        %v1369 = vadd.f32 %v1208, %v1368
        %1370 = vdwg.mxu0
        %1371 = vst [vmem:[%s230] sm:$0xff] %v1228
        %1372 = vst [vmem:[%s230 + $0x8] sm:$0xff] %v1231
        %1373 = vst [vmem:[%s230 + $0x10] sm:$0xff] %v1234
        %1374 = vst [vmem:[%s230 + $0x18] sm:$0xff] %v1237
        %1375 = vst [vmem:[%s230 + $0x20] sm:$0xff] %v1240
        %1376 = vst [vmem:[%s230 + $0x28] sm:$0xff] %v1243
        %1377 = vst [vmem:[%s230 + $0x30] sm:$0xff] %v1246
        %1378 = vst [vmem:[%s230 + $0x38] sm:$0xff] %v1249
        %1379 = vst [vmem:[%s230 + $0x40] sm:$0xff] %v1252
        %1380 = vst [vmem:[%s230 + $0x48] sm:$0xff] %v1255
        %1381 = vst [vmem:[%s230 + $0x50] sm:$0xff] %v1258
        %1382 = vst [vmem:[%s230 + $0x58] sm:$0xff] %v1261
        %1383 = vst [vmem:[%s230 + $0x60] sm:$0xff] %v1264
        %1384 = vst [vmem:[%s230 + $0x68] sm:$0xff] %v1267
        %1385 = vst [vmem:[%s230 + $0x70] sm:$0xff] %v1270
        %1386 = vst [vmem:[%s230 + $0x78] sm:$0xff] %v1273
        %1387 = vst [vmem:[%s230 + $0x80] sm:$0xff] %v1276
        %1388 = vst [vmem:[%s230 + $0x88] sm:$0xff] %v1279
        %1389 = vst [vmem:[%s230 + $0x90] sm:$0xff] %v1282
        %1390 = vst [vmem:[%s230 + $0x98] sm:$0xff] %v1285
        %1391 = vst [vmem:[%s230 + $0xa0] sm:$0xff] %v1288
        %1392 = vst [vmem:[%s230 + $0xa8] sm:$0xff] %v1291
        %1393 = vst [vmem:[%s230 + $0xb0] sm:$0xff] %v1294
        %1394 = vst [vmem:[%s230 + $0xb8] sm:$0xff] %v1297
        %1395 = vst [vmem:[%s230 + $0xc0] sm:$0xff] %v1300
        %1396 = vst [vmem:[%s230 + $0xc8] sm:$0xff] %v1303
        %1397 = vst [vmem:[%s230 + $0xd0] sm:$0xff] %v1306
        %1398 = vst [vmem:[%s230 + $0xd8] sm:$0xff] %v1309
        %1399 = vst [vmem:[%s230 + $0xe0] sm:$0xff] %v1312
        %1400 = vst [vmem:[%s230 + $0xe8] sm:$0xff] %v1315
        %1401 = vst [vmem:[%s230 + $0xf0] sm:$0xff] %v1318
        %1402 = vst [vmem:[%s230 + $0xf8] sm:$0xff] %v1321
        %1403 = vst [vmem:[%s230 + $0x100] sm:$0xff] %v1324
        %1404 = vst [vmem:[%s230 + $0x108] sm:$0xff] %v1327
        %1405 = vst [vmem:[%s230 + $0x110] sm:$0xff] %v1330
        %1406 = vst [vmem:[%s230 + $0x118] sm:$0xff] %v1333
        %1407 = vst [vmem:[%s230 + $0x120] sm:$0xff] %v1336
        %1408 = vst [vmem:[%s230 + $0x128] sm:$0xff] %v1339
        %1409 = vst [vmem:[%s230 + $0x130] sm:$0xff] %v1342
        %1410 = vst [vmem:[%s230 + $0x138] sm:$0xff] %v1345
        %1411 = vst [vmem:[%s230 + $0x140] sm:$0xff] %v1348
        %1412 = vst [vmem:[%s230 + $0x148] sm:$0xff] %v1351
        %1413 = vst [vmem:[%s230 + $0x150] sm:$0xff] %v1354
        %1414 = vst [vmem:[%s230 + $0x158] sm:$0xff] %v1357
        %1415 = vst [vmem:[%s230 + $0x160] sm:$0xff] %v1360
        %1416 = vst [vmem:[%s230 + $0x168] sm:$0xff] %v1363
        %1417 = vst [vmem:[%s230 + $0x170] sm:$0xff] %v1366
        %1418 = vst [vmem:[%s230 + $0x178] sm:$0xff] %v1369
        %s1419 = sand.u32 %s97, 1
        %s1420 = scalar_lea.sflag [#allocation4], %s1419
        %s1421 = sand.u32 %s97, 1
        %s1422 = smul.addr %s1421, 384
        %s1423 = scalar_lea.vmem [#allocation8], %s1422
        // Predicated region
        $region45: #{tpu_custom_call.1} parent=31 // pred_check
          %p1424 = pneg %p107
        $region46: #{tpu_custom_call.1} parent=31 // pred_check_branch
          %1426 = sbr.rel (%p1424) target = $region48
        $region47: #{tpu_custom_call.1} parent=31 // pred_region
          %s1427 = smul.u32 48, %s21
          %s1428 = ssub.s32 160, %s1427
          %p1429 = scmp.lt.s32.totalorder %s1428, 48
          %s1430 = scalar_select %p1429, %s1428, 48
          %s1431 = smul.u32 8, %s1430
          %s1432 = ssub.s32 384, %s1431
          %s1433 = sshll.u32 %s1432, 4
          %1434 = vsyncadd %s1420, %s1433
          %p1435 = scmp.ne.s32.totalorder 0, %s1431
          %s1436 = smul.addr %s1427, 8
          %s1437 = scalar_lea.hbm %s3, %s1436
          %s1438 = smul.u32 8, %s1430
          %s1439 = sshll.u32 %s1423, 4
          %s1440 = int_to_ptr.vmem [resolvable:$true] %s1439
          %s1441 = sshll.u32 %s1437, 4
          %s1442 = int_to_ptr.hbm [resolvable:$true] %s1441
          %s1443 = sshll.u32 %s1438, 4
          %1447 = dma.vmem_to_hbm [thread:$0]  (%p1435), %s1440, %s1443, %s1442, %s1420, 128, 128, 8
        $region48: #{tpu_custom_call.1} parent=31 // pred_fallthru
          _
      $region32: #{tpu_custom_call.1} parent=5 // pred_fallthru
        _
      %p1448 = scmp.le.s32.totalorder 2, %s16
      // Predicated region
      $region49: #{tpu_custom_call.1} parent=5 // pred_check
        %p1449 = pneg %p1448
      $region50: #{tpu_custom_call.1} parent=5 // pred_check_branch
        %1451 = sbr.rel (%p1449) target = $region52
      $region51: #{tpu_custom_call.1} parent=5 // pred_region
        %s1452 = ssub.s32 %s16, 2
        // Predicated region
        $region53: #{tpu_custom_call.1} parent=51 // pred_check
          %p1453 = pneg %p113
        $region54: #{tpu_custom_call.1} parent=51 // pred_check_branch
          %1455 = sbr.rel (%p1453) target = $region56
        $region55: #{tpu_custom_call.1} parent=51 // pred_region
          %s1456 = sand.u32 %s98, 1
          %s1457 = scalar_lea.sflag [#allocation4], %s1456
          %s1458 = sand.u32 %s98, 1
          %s1459 = smul.addr %s1458, 384
          %s1460 = scalar_lea.vmem [#allocation8], %s1459
          %1462 = dma.done %s1457, 6144
        $region56: #{tpu_custom_call.1} parent=51 // pred_fallthru
          _
      $region52: #{tpu_custom_call.1} parent=5 // pred_fallthru
        _
    $region6: #{tpu_custom_call.1} parent=1 // loop_footer
      %s20 = sadd.s32 1, %s16
    $region7: #{tpu_custom_call.1} parent=1 // loop_footer_branch
      %15 = sbr.rel target = $region3
    $region8: #{tpu_custom_call.1} parent=1 // loop_exit
      _
    %1463 = vsyncpa [#allocation3], 1
    %s1464 = scalar_lea.sflag [#allocation3], 1
    %1465 = vsyncpa %s1464, 1
    %1466 = vsyncpa [#allocation6], 1
    %1467 = vsyncpa [#allocation4], 1
    %s1468 = scalar_lea.sflag [#allocation4], 1
    %1469 = vsyncpa %s1468, 1

</llo_original>
